<compile_context>
chip_gen: v6e
topology: v6e:2x2x1
jax: 0.10.0
libtpu: 0.0.40
codegen_flags: <defaults>
</compile_context>

<pallas_src>
import math

import jax
import jax.numpy as jnp
import numpy as np
from jax.experimental import pallas as pl
from jax.experimental.pallas import tpu as pltpu

# ---------------- configuration (mirrors args / obs_shape) -------------------
NUM_AGENTS = 4                         # args.num_agents
SINGLE_OBS = 12                        # obs_dim // num_agents
OBS_DIM = NUM_AGENTS * SINGLE_OBS      # 48, obs_shape[0]
HIDDEN = 32                            # args.hidden_size
NHEAD = 4                              # TransformerEncoderLayer nhead
HEAD_DIM = HIDDEN // NHEAD
FFN = HIDDEN // 4                      # dim_feedforward
BATCH = 8                              # rows of x after reshape(-1, ...)
EPS = 1e-5                             # nn.LayerNorm default eps


# ---------------------------- Pallas kernel ----------------------------------
def trans_base_kernel(
    x_ref,                 # (N, OBS_DIM)          f32
    fn_g_ref, fn_b_ref,    # (1, OBS_DIM)          f32   feature_norm
    neg_ref,               # (A*N, A*N)            f32   block-diag attn bias
    w_fused_ref,           # (D, 4H)               bf16  [w_mlp1 | w_mlp1 @ w_in]
    b_fused_ref,           # (1, 4H)               f32
    w_out_h_ref,           # (NHEAD, dh, H)        bf16  attn out-proj per head
    b_out_ref,             # (1, H)                f32
    g1_ref, be1_ref,       # (1, H)                f32   norm1
    w_ff1_ref, b_ff1_ref,  # (H, F) bf16, (1, F)   f32
    w_ff2_ref, b_ff2_ref,  # (F, H) bf16, (1, H)   f32
    g2_ref, be2_ref,       # (1, H)                f32   norm2
    o_ref,                 # (N, H)                f32
):
    n = x_ref.shape[0]
    A, D, H, dh = NUM_AGENTS, SINGLE_OBS, HIDDEN, HEAD_DIM
    scale = 1.0 / math.sqrt(dh)
    bf16, f32 = jnp.bfloat16, jnp.float32

    def layer_norm(z, g, b):
        mu = jnp.mean(z, axis=-1, keepdims=True)
        var = jnp.mean((z - mu) ** 2, axis=-1, keepdims=True)
        return (z - mu) * jax.lax.rsqrt(var + EPS) * g + b

    # ---- feature_norm: LayerNorm over obs_dim (f32) --------------------------
    xn = layer_norm(x_ref[...], fn_g_ref[...], fn_b_ref[...])          # (n, A*D)

    # ---- reshape(-1, A, D) + agent-major layout, done in-kernel --------------
    # row a*n + i of xf  <->  torch element (i, agent a, :)
    xf = jnp.concatenate([xn[:, a * D:(a + 1) * D] for a in range(A)], axis=0)

    # ---- fused mlp1 + QKV projection: one 128-lane-wide MXU pass -------------
    y = jnp.dot(xf.astype(bf16), w_fused_ref[...],
                preferred_element_type=f32) + b_fused_ref[...]          # (A*n, 4H)
    h = y[:, 0:H]                                                       # mlp1 out
    y_b = y.astype(bf16)
    # head-batched q/k/v: (NHEAD, A*n, dh); y columns are [h | q | k | v]
    q = jnp.stack([y_b[:, 1 * H + i * dh:1 * H + (i + 1) * dh] for i in range(NHEAD)], axis=0)
    k = jnp.stack([y_b[:, 2 * H + i * dh:2 * H + (i + 1) * dh] for i in range(NHEAD)], axis=0)
    v = jnp.stack([y_b[:, 3 * H + i * dh:3 * H + (i + 1) * dh] for i in range(NHEAD)], axis=0)

    # ---- multi-head self-attention -------------------------------------------
    # batch dim = heads, sequence dim = A*n, with a block-diagonal additive bias
    # so each agent only attends within its own n rows (== per-agent attention).
    s = jnp.einsum('bqd,bkd->bqk', q, k,
                   preferred_element_type=f32) * scale                  # (NH, A*n, A*n)
    s = s + neg_ref[...]
    s = s - jnp.max(s, axis=-1, keepdims=True)
    p = jnp.exp(s)
    p = p * pl.reciprocal(jnp.sum(p, axis=-1, keepdims=True), approx=True)

    o = jnp.einsum('bqk,bkd->bqd', p.astype(bf16), v,
                   preferred_element_type=f32)                          # (NH, A*n, dh)

    # out-projection: sum_h  o_h @ w_out[h*dh:(h+1)*dh, :]  (+ bias)
    po = jnp.einsum('bnd,bdo->bno', o.astype(bf16), w_out_h_ref[...],
                    preferred_element_type=f32)                         # (NH, A*n, H)
    attn = jnp.sum(po, axis=0) + b_out_ref[...]                         # (A*n, H)

    # ---- residual + LayerNorm1 ------------------------------------------------
    src = layer_norm(h + attn, g1_ref[...], be1_ref[...])

    # ---- feed-forward: Linear -> ReLU -> Linear -------------------------------
    ff = jnp.dot(src.astype(bf16), w_ff1_ref[...],
                 preferred_element_type=f32) + b_ff1_ref[...]
    ff = jnp.maximum(ff, 0.0)
    ff = jnp.dot(ff.astype(bf16), w_ff2_ref[...],
                 preferred_element_type=f32) + b_ff2_ref[...]

    # ---- residual + LayerNorm2 ------------------------------------------------
    out = layer_norm(src + ff, g2_ref[...], be2_ref[...])               # (A*n, H)

    # ---- torch.mean(x, dim=1): mean over agents = mean of the A row-blocks ----
    acc = out[0:n, :]
    for a in range(1, A):
        acc = acc + out[a * n:(a + 1) * n, :]
    o_ref[...] = acc * (1.0 / A)


# ------------------------------ wrapper ---------------------------------------
_VMEM = pl.BlockSpec(memory_space=pltpu.MemorySpace.VMEM)


def trans_base_forward(x, params):
    """x: (N, OBS_DIM) float32 -> (N, HIDDEN) float32, one fused Pallas kernel."""
    n = x.shape[0]

    # Trace-time weight fusion: mlp1 composed with the QKV in-projection (exact
    # linear composition), giving a single (D, 4H) = (12, 128) lane-dense weight.
    # Matmul weights are cast to bf16 for the MXU; biases / LN params stay f32.
    w_mlp1, b_mlp1 = params['w_mlp1'], params['b_mlp1']
    w_in, b_in = params['w_in'], params['b_in']
    w_fused = jnp.concatenate([w_mlp1, w_mlp1 @ w_in], axis=1).astype(jnp.bfloat16)
    b_fused = jnp.concatenate([b_mlp1, b_mlp1 @ w_in + b_in], axis=1)
    w_out_heads = params['w_out'].reshape(NHEAD, HEAD_DIM, HIDDEN).astype(jnp.bfloat16)

    # Block-diagonal additive attention bias (agents attend only to themselves).
    agent_id = jnp.repeat(jnp.arange(NUM_AGENTS), n)
    neg = jnp.where(agent_id[:, None] == agent_id[None, :], 0.0, -1e30)
    neg = neg.astype(jnp.float32)

    return pl.pallas_call(
        trans_base_kernel,
        out_shape=jax.ShapeDtypeStruct((n, HIDDEN), jnp.float32),
        in_specs=[_VMEM] * 16,
        out_specs=_VMEM,
    )(
        x,
        params['fn_g'], params['fn_b'],
        neg,
        w_fused, b_fused,
        w_out_heads, params['b_out'],
        params['g1'], params['be1'],
        params['w_ff1'].astype(jnp.bfloat16), params['b_ff1'],
        params['w_ff2'].astype(jnp.bfloat16), params['b_ff2'],
        params['g2'], params['be2'],
    )


# --------------------------- pure-JAX reference --------------------------------
def reference_forward(x, p):
    def ln(z, g, b):
        m = z.mean(-1, keepdims=True)
        v = ((z - m) ** 2).mean(-1, keepdims=True)
        return (z - m) / jnp.sqrt(v + EPS) * g + b

    xn = ln(x, p['fn_g'][0], p['fn_b'][0])
    n = x.shape[0]
    x3 = xn.reshape(n, NUM_AGENTS, SINGLE_OBS)            # (B, A, D), torch layout
    h = x3 @ p['w_mlp1'] + p['b_mlp1'][0]                 # (B, A, H)
    qkv = h @ p['w_in'] + p['b_in'][0]
    q, k, v = (qkv[..., :HIDDEN], qkv[..., HIDDEN:2 * HIDDEN], qkv[..., 2 * HIDDEN:])
    outs = []
    for hh in range(NHEAD):
        sl = slice(hh * HEAD_DIM, (hh + 1) * HEAD_DIM)
        s = jnp.einsum('sad,tad->ast', q[..., sl], k[..., sl]) / math.sqrt(HEAD_DIM)
        pa = jax.nn.softmax(s, axis=-1)
        outs.append(jnp.einsum('ast,tad->sad', pa, v[..., sl]))
    attn = jnp.concatenate(outs, -1) @ p['w_out'] + p['b_out'][0]
    src = ln(h + attn, p['g1'][0], p['be1'][0])
    f = jax.nn.relu(src @ p['w_ff1'] + p['b_ff1'][0]) @ p['w_ff2'] + p['b_ff2'][0]
    out = ln(src + f, p['g2'][0], p['be2'][0])
    return out.mean(axis=1)                                # mean over agents


# ------------------------------- params / main ---------------------------------
def make_params(key):
    ks = jax.random.split(key, 10)

    def w(k, shape, scale=0.1):
        return jax.random.normal(k, shape, jnp.float32) * scale

    return {
        'fn_g': jnp.ones((1, OBS_DIM), jnp.float32),
        'fn_b': jnp.zeros((1, OBS_DIM), jnp.float32),
        'w_mlp1': w(ks[0], (SINGLE_OBS, HIDDEN)),
        'b_mlp1': w(ks[1], (1, HIDDEN)),
        'w_in': w(ks[2], (HIDDEN, 3 * HIDDEN)),
        'b_in': w(ks[3], (1, 3 * HIDDEN)),
        'w_out': w(ks[4], (HIDDEN, HIDDEN)),
        'b_out': w(ks[5], (1, HIDDEN)),
        'g1': jnp.ones((1, HIDDEN), jnp.float32),
        'be1': jnp.zeros((1, HIDDEN), jnp.float32),
        'w_ff1': w(ks[6], (HIDDEN, FFN)),
        'b_ff1': w(ks[7], (1, FFN)),
        'w_ff2': w(ks[8], (FFN, HIDDEN)),
        'b_ff2': w(ks[9], (1, HIDDEN)),
        'g2': jnp.ones((1, HIDDEN), jnp.float32),
        'be2': jnp.zeros((1, HIDDEN), jnp.float32),
    }


if __name__ == "__main__":
    root = jax.random.PRNGKey(0)
    kp, kx = jax.random.split(root)
    params = make_params(kp)
    x = jax.random.normal(kx, (BATCH, OBS_DIM), jnp.float32)

    fwd = jax.jit(trans_base_forward)
    out = jax.block_until_ready(fwd(x, params))
    assert out.shape == (BATCH, HIDDEN), out.shape

    ref = jax.block_until_ready(reference_forward(x, params))
    np.testing.assert_allclose(np.asarray(out), np.asarray(ref), rtol=2e-2, atol=2e-2)

    print("KERNEL_OK")
</pallas_src>

<mosaic_0001>
module attributes {stable_mosaic.version = 11 : i64} {
  func.func @trans_base_kernel(%arg0: memref<8x48xf32, #tpu.memory_space<vmem>>, %arg1: memref<1x48xf32, #tpu.memory_space<vmem>>, %arg2: memref<1x48xf32, #tpu.memory_space<vmem>>, %arg3: memref<32x32xf32, #tpu.memory_space<vmem>>, %arg4: memref<12x128xbf16, #tpu.memory_space<vmem>>, %arg5: memref<1x128xf32, #tpu.memory_space<vmem>>, %arg6: memref<4x8x32xbf16, #tpu.memory_space<vmem>>, %arg7: memref<1x32xf32, #tpu.memory_space<vmem>>, %arg8: memref<1x32xf32, #tpu.memory_space<vmem>>, %arg9: memref<1x32xf32, #tpu.memory_space<vmem>>, %arg10: memref<32x8xbf16, #tpu.memory_space<vmem>>, %arg11: memref<1x8xf32, #tpu.memory_space<vmem>>, %arg12: memref<8x32xbf16, #tpu.memory_space<vmem>>, %arg13: memref<1x32xf32, #tpu.memory_space<vmem>>, %arg14: memref<1x32xf32, #tpu.memory_space<vmem>>, %arg15: memref<1x32xf32, #tpu.memory_space<vmem>>, %arg16: memref<8x32xf32, #tpu.memory_space<vmem>>) attributes {dimension_semantics = [], scalar_prefetch = 0 : i64, scratch_operands = 0 : i64, tpu.core_type = #tpu.core_type<tc>} {
    %c0 = arith.constant 0 : index
    %c0_0 = arith.constant 0 : index
    %0 = vector.load %arg0[%c0, %c0_0] : memref<8x48xf32, #tpu.memory_space<vmem>>, vector<8x48xf32>
    %c0_1 = arith.constant 0 : index
    %c0_2 = arith.constant 0 : index
    %1 = vector.load %arg1[%c0_1, %c0_2] : memref<1x48xf32, #tpu.memory_space<vmem>>, vector<1x48xf32>
    %c0_3 = arith.constant 0 : index
    %c0_4 = arith.constant 0 : index
    %2 = vector.load %arg2[%c0_3, %c0_4] : memref<1x48xf32, #tpu.memory_space<vmem>>, vector<1x48xf32>
    %cst = arith.constant dense<0.000000e+00> : vector<8xf32>
    %3 = vector.multi_reduction <add>, %0, %cst [1] : vector<8x48xf32> to vector<8xf32>
    %4 = vector.shape_cast %3 : vector<8xf32> to vector<8x1xf32>
    %cst_5 = arith.constant 4.800000e+01 : f32
    %5 = vector.broadcast %cst_5 : f32 to vector<8x1xf32>
    %6 = arith.divf %4, %5 : vector<8x1xf32>
    %7 = vector.broadcast %6 : vector<8x1xf32> to vector<8x48xf32>
    %8 = arith.subf %0, %7 : vector<8x48xf32>
    %9 = arith.mulf %8, %8 : vector<8x48xf32>
    %cst_6 = arith.constant dense<0.000000e+00> : vector<8xf32>
    %10 = vector.multi_reduction <add>, %9, %cst_6 [1] : vector<8x48xf32> to vector<8xf32>
    %11 = vector.shape_cast %10 : vector<8xf32> to vector<8x1xf32>
    %cst_7 = arith.constant 4.800000e+01 : f32
    %12 = vector.broadcast %cst_7 : f32 to vector<8x1xf32>
    %13 = arith.divf %11, %12 : vector<8x1xf32>
    %14 = vector.broadcast %6 : vector<8x1xf32> to vector<8x48xf32>
    %15 = arith.subf %0, %14 : vector<8x48xf32>
    %cst_8 = arith.constant 9.99999974E-6 : f32
    %16 = vector.broadcast %cst_8 : f32 to vector<8x1xf32>
    %17 = arith.addf %13, %16 : vector<8x1xf32>
    %18 = math.rsqrt %17 : vector<8x1xf32>
    %19 = vector.broadcast %18 : vector<8x1xf32> to vector<8x48xf32>
    %20 = arith.mulf %15, %19 : vector<8x48xf32>
    %21 = vector.broadcast %1 : vector<1x48xf32> to vector<8x48xf32>
    %22 = arith.mulf %20, %21 : vector<8x48xf32>
    %23 = vector.broadcast %2 : vector<1x48xf32> to vector<8x48xf32>
    %24 = arith.addf %22, %23 : vector<8x48xf32>
    %25 = vector.extract_strided_slice %24 {offsets = [0, 0], sizes = [8, 12], strides = [1, 1]} : vector<8x48xf32> to vector<8x12xf32>
    %26 = vector.extract_strided_slice %24 {offsets = [0, 12], sizes = [8, 12], strides = [1, 1]} : vector<8x48xf32> to vector<8x12xf32>
    %27 = vector.extract_strided_slice %24 {offsets = [0, 24], sizes = [8, 12], strides = [1, 1]} : vector<8x48xf32> to vector<8x12xf32>
    %28 = vector.extract_strided_slice %24 {offsets = [0, 36], sizes = [8, 12], strides = [1, 1]} : vector<8x48xf32> to vector<8x12xf32>
    %29 = tpu.concatenate %25, %26, %27, %28 in 0 : vector<8x12xf32>, vector<8x12xf32>, vector<8x12xf32>, vector<8x12xf32> -> vector<32x12xf32>
    %30 = arith.truncf %29 : vector<32x12xf32> to vector<32x12xbf16>
    %c0_9 = arith.constant 0 : index
    %c0_10 = arith.constant 0 : index
    %31 = vector.load %arg4[%c0_9, %c0_10] : memref<12x128xbf16, #tpu.memory_space<vmem>>, vector<12x128xbf16>
    %cst_11 = arith.constant dense<0.000000e+00> : vector<32x128xf32>
    %32 = tpu.matmul %30, %31, %cst_11 {dimension_numbers = #tpu.dot_dimension_numbers<[1], [0], [0], [1], [0, 0, 1, 1], [], []>} : vector<32x12xbf16>, vector<12x128xbf16>, vector<32x128xf32> -> vector<32x128xf32>
    %c0_12 = arith.constant 0 : index
    %c0_13 = arith.constant 0 : index
    %33 = vector.load %arg5[%c0_12, %c0_13] : memref<1x128xf32, #tpu.memory_space<vmem>>, vector<1x128xf32>
    %34 = vector.broadcast %33 : vector<1x128xf32> to vector<32x128xf32>
    %35 = arith.addf %32, %34 : vector<32x128xf32>
    %36 = vector.extract_strided_slice %35 {offsets = [0, 0], sizes = [32, 32], strides = [1, 1]} : vector<32x128xf32> to vector<32x32xf32>
    %37 = arith.truncf %35 : vector<32x128xf32> to vector<32x128xbf16>
    %38 = vector.extract_strided_slice %37 {offsets = [0, 32], sizes = [32, 8], strides = [1, 1]} : vector<32x128xbf16> to vector<32x8xbf16>
    %39 = vector.extract_strided_slice %37 {offsets = [0, 40], sizes = [32, 8], strides = [1, 1]} : vector<32x128xbf16> to vector<32x8xbf16>
    %40 = vector.extract_strided_slice %37 {offsets = [0, 48], sizes = [32, 8], strides = [1, 1]} : vector<32x128xbf16> to vector<32x8xbf16>
    %41 = vector.extract_strided_slice %37 {offsets = [0, 56], sizes = [32, 8], strides = [1, 1]} : vector<32x128xbf16> to vector<32x8xbf16>
    %42 = vector.shape_cast %38 : vector<32x8xbf16> to vector<1x32x8xbf16>
    %43 = vector.shape_cast %39 : vector<32x8xbf16> to vector<1x32x8xbf16>
    %44 = vector.shape_cast %40 : vector<32x8xbf16> to vector<1x32x8xbf16>
    %45 = vector.shape_cast %41 : vector<32x8xbf16> to vector<1x32x8xbf16>
    %46 = tpu.concatenate %42, %43, %44, %45 in 0 : vector<1x32x8xbf16>, vector<1x32x8xbf16>, vector<1x32x8xbf16>, vector<1x32x8xbf16> -> vector<4x32x8xbf16>
    %47 = vector.extract_strided_slice %37 {offsets = [0, 64], sizes = [32, 8], strides = [1, 1]} : vector<32x128xbf16> to vector<32x8xbf16>
    %48 = vector.extract_strided_slice %37 {offsets = [0, 72], sizes = [32, 8], strides = [1, 1]} : vector<32x128xbf16> to vector<32x8xbf16>
    %49 = vector.extract_strided_slice %37 {offsets = [0, 80], sizes = [32, 8], strides = [1, 1]} : vector<32x128xbf16> to vector<32x8xbf16>
    %50 = vector.extract_strided_slice %37 {offsets = [0, 88], sizes = [32, 8], strides = [1, 1]} : vector<32x128xbf16> to vector<32x8xbf16>
    %51 = vector.shape_cast %47 : vector<32x8xbf16> to vector<1x32x8xbf16>
    %52 = vector.shape_cast %48 : vector<32x8xbf16> to vector<1x32x8xbf16>
    %53 = vector.shape_cast %49 : vector<32x8xbf16> to vector<1x32x8xbf16>
    %54 = vector.shape_cast %50 : vector<32x8xbf16> to vector<1x32x8xbf16>
    %55 = tpu.concatenate %51, %52, %53, %54 in 0 : vector<1x32x8xbf16>, vector<1x32x8xbf16>, vector<1x32x8xbf16>, vector<1x32x8xbf16> -> vector<4x32x8xbf16>
    %56 = vector.extract_strided_slice %37 {offsets = [0, 96], sizes = [32, 8], strides = [1, 1]} : vector<32x128xbf16> to vector<32x8xbf16>
    %57 = vector.extract_strided_slice %37 {offsets = [0, 104], sizes = [32, 8], strides = [1, 1]} : vector<32x128xbf16> to vector<32x8xbf16>
    %58 = vector.extract_strided_slice %37 {offsets = [0, 112], sizes = [32, 8], strides = [1, 1]} : vector<32x128xbf16> to vector<32x8xbf16>
    %59 = vector.extract_strided_slice %37 {offsets = [0, 120], sizes = [32, 8], strides = [1, 1]} : vector<32x128xbf16> to vector<32x8xbf16>
    %60 = vector.shape_cast %56 : vector<32x8xbf16> to vector<1x32x8xbf16>
    %61 = vector.shape_cast %57 : vector<32x8xbf16> to vector<1x32x8xbf16>
    %62 = vector.shape_cast %58 : vector<32x8xbf16> to vector<1x32x8xbf16>
    %63 = vector.shape_cast %59 : vector<32x8xbf16> to vector<1x32x8xbf16>
    %64 = tpu.concatenate %60, %61, %62, %63 in 0 : vector<1x32x8xbf16>, vector<1x32x8xbf16>, vector<1x32x8xbf16>, vector<1x32x8xbf16> -> vector<4x32x8xbf16>
    "tpu.trace_start"() <{level = 10 : i32, message = "bqd,bkd->bqk"}> : () -> ()
    %cst_14 = arith.constant dense<0.000000e+00> : vector<4x32x32xf32>
    %65 = tpu.matmul %46, %55, %cst_14 {dimension_numbers = #tpu.dot_dimension_numbers<[2], [2], [1], [1], [0, 0, 0, 1, 1, 1], [0], [0]>} : vector<4x32x8xbf16>, vector<4x32x8xbf16>, vector<4x32x32xf32> -> vector<4x32x32xf32>
    "tpu.trace_stop"() : () -> ()
    %cst_15 = arith.constant 0.353553385 : f32
    %66 = vector.broadcast %cst_15 : f32 to vector<4x32x32xf32>
    %67 = arith.mulf %65, %66 : vector<4x32x32xf32>
    %c0_16 = arith.constant 0 : index
    %c0_17 = arith.constant 0 : index
    %68 = vector.load %arg3[%c0_16, %c0_17] : memref<32x32xf32, #tpu.memory_space<vmem>>, vector<32x32xf32>
    %69 = vector.shape_cast %68 : vector<32x32xf32> to vector<1x32x32xf32>
    %70 = vector.broadcast %69 : vector<1x32x32xf32> to vector<4x32x32xf32>
    %71 = arith.addf %67, %70 : vector<4x32x32xf32>
    %cst_18 = arith.constant dense<0xFF800000> : vector<4x32xf32>
    %72 = vector.multi_reduction <maximumf>, %71, %cst_18 [2] : vector<4x32x32xf32> to vector<4x32xf32>
    %73 = vector.shape_cast %72 : vector<4x32xf32> to vector<4x32x1xf32>
    %74 = vector.broadcast %73 : vector<4x32x1xf32> to vector<4x32x32xf32>
    %75 = arith.subf %71, %74 : vector<4x32x32xf32>
    %76 = math.exp %75 : vector<4x32x32xf32>
    %cst_19 = arith.constant dense<0.000000e+00> : vector<4x32xf32>
    %77 = vector.multi_reduction <add>, %76, %cst_19 [2] : vector<4x32x32xf32> to vector<4x32xf32>
    %78 = vector.shape_cast %77 : vector<4x32xf32> to vector<4x32x1xf32>
    %79 = tpu.reciprocal %78 {approx = true} : vector<4x32x1xf32> -> vector<4x32x1xf32>
    %80 = vector.broadcast %79 : vector<4x32x1xf32> to vector<4x32x32xf32>
    %81 = arith.mulf %76, %80 : vector<4x32x32xf32>
    %82 = arith.truncf %81 : vector<4x32x32xf32> to vector<4x32x32xbf16>
    "tpu.trace_start"() <{level = 10 : i32, message = "bqk,bkd->bqd"}> : () -> ()
    %cst_20 = arith.constant dense<0.000000e+00> : vector<4x32x8xf32>
    %83 = tpu.matmul %82, %64, %cst_20 {dimension_numbers = #tpu.dot_dimension_numbers<[2], [1], [1], [2], [0, 0, 0, 1, 1, 2], [0], [0]>} : vector<4x32x32xbf16>, vector<4x32x8xbf16>, vector<4x32x8xf32> -> vector<4x32x8xf32>
    "tpu.trace_stop"() : () -> ()
    %84 = arith.truncf %83 : vector<4x32x8xf32> to vector<4x32x8xbf16>
    %c0_21 = arith.constant 0 : index
    %c0_22 = arith.constant 0 : index
    %c0_23 = arith.constant 0 : index
    %85 = vector.load %arg6[%c0_21, %c0_22, %c0_23] : memref<4x8x32xbf16, #tpu.memory_space<vmem>>, vector<4x8x32xbf16>
    "tpu.trace_start"() <{level = 10 : i32, message = "bnd,bdo->bno"}> : () -> ()
    %cst_24 = arith.constant dense<0.000000e+00> : vector<4x32x32xf32>
    %86 = tpu.matmul %84, %85, %cst_24 {dimension_numbers = #tpu.dot_dimension_numbers<[2], [1], [1], [2], [0, 0, 0, 1, 1, 2], [0], [0]>} : vector<4x32x8xbf16>, vector<4x8x32xbf16>, vector<4x32x32xf32> -> vector<4x32x32xf32>
    "tpu.trace_stop"() : () -> ()
    %cst_25 = arith.constant dense<0.000000e+00> : vector<32x32xf32>
    %87 = vector.multi_reduction <add>, %86, %cst_25 [0] : vector<4x32x32xf32> to vector<32x32xf32>
    %c0_26 = arith.constant 0 : index
    %c0_27 = arith.constant 0 : index
    %88 = vector.load %arg7[%c0_26, %c0_27] : memref<1x32xf32, #tpu.memory_space<vmem>>, vector<1x32xf32>
    %89 = vector.broadcast %88 : vector<1x32xf32> to vector<32x32xf32>
    %90 = arith.addf %87, %89 : vector<32x32xf32>
    %91 = arith.addf %36, %90 : vector<32x32xf32>
    %c0_28 = arith.constant 0 : index
    %c0_29 = arith.constant 0 : index
    %92 = vector.load %arg8[%c0_28, %c0_29] : memref<1x32xf32, #tpu.memory_space<vmem>>, vector<1x32xf32>
    %c0_30 = arith.constant 0 : index
    %c0_31 = arith.constant 0 : index
    %93 = vector.load %arg9[%c0_30, %c0_31] : memref<1x32xf32, #tpu.memory_space<vmem>>, vector<1x32xf32>
    %cst_32 = arith.constant dense<0.000000e+00> : vector<32xf32>
    %94 = vector.multi_reduction <add>, %91, %cst_32 [1] : vector<32x32xf32> to vector<32xf32>
    %95 = vector.shape_cast %94 : vector<32xf32> to vector<32x1xf32>
    %cst_33 = arith.constant 3.200000e+01 : f32
    %96 = vector.broadcast %cst_33 : f32 to vector<32x1xf32>
    %97 = arith.divf %95, %96 : vector<32x1xf32>
    %98 = vector.broadcast %97 : vector<32x1xf32> to vector<32x32xf32>
    %99 = arith.subf %91, %98 : vector<32x32xf32>
    %100 = arith.mulf %99, %99 : vector<32x32xf32>
    %cst_34 = arith.constant dense<0.000000e+00> : vector<32xf32>
    %101 = vector.multi_reduction <add>, %100, %cst_34 [1] : vector<32x32xf32> to vector<32xf32>
    %102 = vector.shape_cast %101 : vector<32xf32> to vector<32x1xf32>
    %cst_35 = arith.constant 3.200000e+01 : f32
    %103 = vector.broadcast %cst_35 : f32 to vector<32x1xf32>
    %104 = arith.divf %102, %103 : vector<32x1xf32>
    %105 = vector.broadcast %97 : vector<32x1xf32> to vector<32x32xf32>
    %106 = arith.subf %91, %105 : vector<32x32xf32>
    %cst_36 = arith.constant 9.99999974E-6 : f32
    %107 = vector.broadcast %cst_36 : f32 to vector<32x1xf32>
    %108 = arith.addf %104, %107 : vector<32x1xf32>
    %109 = math.rsqrt %108 : vector<32x1xf32>
    %110 = vector.broadcast %109 : vector<32x1xf32> to vector<32x32xf32>
    %111 = arith.mulf %106, %110 : vector<32x32xf32>
    %112 = vector.broadcast %92 : vector<1x32xf32> to vector<32x32xf32>
    %113 = arith.mulf %111, %112 : vector<32x32xf32>
    %114 = vector.broadcast %93 : vector<1x32xf32> to vector<32x32xf32>
    %115 = arith.addf %113, %114 : vector<32x32xf32>
    %116 = arith.truncf %115 : vector<32x32xf32> to vector<32x32xbf16>
    %c0_37 = arith.constant 0 : index
    %c0_38 = arith.constant 0 : index
    %117 = vector.load %arg10[%c0_37, %c0_38] : memref<32x8xbf16, #tpu.memory_space<vmem>>, vector<32x8xbf16>
    %cst_39 = arith.constant dense<0.000000e+00> : vector<32x8xf32>
    %118 = tpu.matmul %116, %117, %cst_39 {dimension_numbers = #tpu.dot_dimension_numbers<[1], [0], [0], [1], [0, 0, 1, 1], [], []>} : vector<32x32xbf16>, vector<32x8xbf16>, vector<32x8xf32> -> vector<32x8xf32>
    %c0_40 = arith.constant 0 : index
    %c0_41 = arith.constant 0 : index
    %119 = vector.load %arg11[%c0_40, %c0_41] : memref<1x8xf32, #tpu.memory_space<vmem>>, vector<1x8xf32>
    %120 = vector.broadcast %119 : vector<1x8xf32> to vector<32x8xf32>
    %121 = arith.addf %118, %120 : vector<32x8xf32>
    %cst_42 = arith.constant 0.000000e+00 : f32
    %122 = vector.broadcast %cst_42 : f32 to vector<32x8xf32>
    %123 = arith.maximumf %121, %122 : vector<32x8xf32>
    %124 = arith.truncf %123 : vector<32x8xf32> to vector<32x8xbf16>
    %c0_43 = arith.constant 0 : index
    %c0_44 = arith.constant 0 : index
    %125 = vector.load %arg12[%c0_43, %c0_44] : memref<8x32xbf16, #tpu.memory_space<vmem>>, vector<8x32xbf16>
    %cst_45 = arith.constant dense<0.000000e+00> : vector<32x32xf32>
    %126 = tpu.matmul %124, %125, %cst_45 {dimension_numbers = #tpu.dot_dimension_numbers<[1], [0], [0], [1], [0, 0, 1, 1], [], []>} : vector<32x8xbf16>, vector<8x32xbf16>, vector<32x32xf32> -> vector<32x32xf32>
    %c0_46 = arith.constant 0 : index
    %c0_47 = arith.constant 0 : index
    %127 = vector.load %arg13[%c0_46, %c0_47] : memref<1x32xf32, #tpu.memory_space<vmem>>, vector<1x32xf32>
    %128 = vector.broadcast %127 : vector<1x32xf32> to vector<32x32xf32>
    %129 = arith.addf %126, %128 : vector<32x32xf32>
    %130 = arith.addf %115, %129 : vector<32x32xf32>
    %c0_48 = arith.constant 0 : index
    %c0_49 = arith.constant 0 : index
    %131 = vector.load %arg14[%c0_48, %c0_49] : memref<1x32xf32, #tpu.memory_space<vmem>>, vector<1x32xf32>
    %c0_50 = arith.constant 0 : index
    %c0_51 = arith.constant 0 : index
    %132 = vector.load %arg15[%c0_50, %c0_51] : memref<1x32xf32, #tpu.memory_space<vmem>>, vector<1x32xf32>
    %cst_52 = arith.constant dense<0.000000e+00> : vector<32xf32>
    %133 = vector.multi_reduction <add>, %130, %cst_52 [1] : vector<32x32xf32> to vector<32xf32>
    %134 = vector.shape_cast %133 : vector<32xf32> to vector<32x1xf32>
    %cst_53 = arith.constant 3.200000e+01 : f32
    %135 = vector.broadcast %cst_53 : f32 to vector<32x1xf32>
    %136 = arith.divf %134, %135 : vector<32x1xf32>
    %137 = vector.broadcast %136 : vector<32x1xf32> to vector<32x32xf32>
    %138 = arith.subf %130, %137 : vector<32x32xf32>
    %139 = arith.mulf %138, %138 : vector<32x32xf32>
    %cst_54 = arith.constant dense<0.000000e+00> : vector<32xf32>
    %140 = vector.multi_reduction <add>, %139, %cst_54 [1] : vector<32x32xf32> to vector<32xf32>
    %141 = vector.shape_cast %140 : vector<32xf32> to vector<32x1xf32>
    %cst_55 = arith.constant 3.200000e+01 : f32
    %142 = vector.broadcast %cst_55 : f32 to vector<32x1xf32>
    %143 = arith.divf %141, %142 : vector<32x1xf32>
    %144 = vector.broadcast %136 : vector<32x1xf32> to vector<32x32xf32>
    %145 = arith.subf %130, %144 : vector<32x32xf32>
    %cst_56 = arith.constant 9.99999974E-6 : f32
    %146 = vector.broadcast %cst_56 : f32 to vector<32x1xf32>
    %147 = arith.addf %143, %146 : vector<32x1xf32>
    %148 = math.rsqrt %147 : vector<32x1xf32>
    %149 = vector.broadcast %148 : vector<32x1xf32> to vector<32x32xf32>
    %150 = arith.mulf %145, %149 : vector<32x32xf32>
    %151 = vector.broadcast %131 : vector<1x32xf32> to vector<32x32xf32>
    %152 = arith.mulf %150, %151 : vector<32x32xf32>
    %153 = vector.broadcast %132 : vector<1x32xf32> to vector<32x32xf32>
    %154 = arith.addf %152, %153 : vector<32x32xf32>
    %155 = vector.extract_strided_slice %154 {offsets = [0, 0], sizes = [8, 32], strides = [1, 1]} : vector<32x32xf32> to vector<8x32xf32>
    %156 = vector.extract_strided_slice %154 {offsets = [8, 0], sizes = [8, 32], strides = [1, 1]} : vector<32x32xf32> to vector<8x32xf32>
    %157 = arith.addf %155, %156 : vector<8x32xf32>
    %158 = vector.extract_strided_slice %154 {offsets = [16, 0], sizes = [8, 32], strides = [1, 1]} : vector<32x32xf32> to vector<8x32xf32>
    %159 = arith.addf %157, %158 : vector<8x32xf32>
    %160 = vector.extract_strided_slice %154 {offsets = [24, 0], sizes = [8, 32], strides = [1, 1]} : vector<32x32xf32> to vector<8x32xf32>
    %161 = arith.addf %159, %160 : vector<8x32xf32>
    %cst_57 = arith.constant 2.500000e-01 : f32
    %162 = vector.broadcast %cst_57 : f32 to vector<8x32xf32>
    %163 = arith.mulf %161, %162 : vector<8x32xf32>
    %c0_58 = arith.constant 0 : index
    %c0_59 = arith.constant 0 : index
    %164 = vector.load %arg16[%c0_58, %c0_59] : memref<8x32xf32, #tpu.memory_space<vmem>>, vector<8x32xf32>
    tpu.vector_store %arg16[%c0_58, %c0_59], %163 {strides = array<i32>} : memref<8x32xf32, #tpu.memory_space<vmem>>, vector<8x32xf32>,
    return
  }
}

</mosaic_0001>

<llo_original>
// kernel: eq.8
$region0: #{eq.8}
  %s0 = inlined_call_operand.vmem [shape: s32[4,8], index: 0, kind: input, shape index: {}]
  %s1 = inlined_call_operand.vmem [shape: s32[32], index: 1, kind: output, shape index: {}]
  $region1: #{eq.8} parent=0
    #allocation0 [shape = 'u8[4096]{0}', space=vmem, size = 0x1000, scoped, tag = 'scoped mem for output reshape']
    #allocation1 [shape = 'u8[4096]{0}', space=vmem, size = 0x1000, scoped, tag = 'scoped mem for input reshape']
    %s3 = sshll.u32 1, 4
    %s4 = ssub.s32 %s3, 1
    %v5 = vld [vmem:[%s0] sm:%s4]
    %6 = vst [vmem:[#allocation1] sm:%s4] %v5
    %v7 = vld [vmem:[#allocation1] sm:$0x1]
    %vm8 = vcmask 64512
    %9 = vst.msk [vmem:[#allocation0] sm:$0x1] %vm8, %v7
    %s10 = scalar_lea.vmem [#allocation1], 3
    %v11 = vld [vmem:[%s10] sm:$0x1]
    %12 = vrot.lane.b32.xlu0 %v11, 24
    %v13 = vpop.permute.xlu0 %12
    %vm14 = vcmask 261312
    %15 = vst.msk [vmem:[#allocation0] sm:$0x1] %vm14, %v13
    %s16 = scalar_lea.vmem [#allocation1], 2
    %v17 = vld [vmem:[%s16] sm:$0x1]
    %18 = vrot.lane.b32.xlu0 %v17, 16
    %v19 = vpop.permute.xlu0 %18
    %vm20 = vcmask 195712
    %21 = vst.msk [vmem:[#allocation0] sm:$0x1] %vm20, %v19
    %s22 = scalar_lea.vmem [#allocation1], 1
    %v23 = vld [vmem:[%s22] sm:$0x1]
    %24 = vrot.lane.b32.xlu0 %v23, 8
    %v25 = vpop.permute.xlu0 %24
    %vm26 = vcmask 130112
    %27 = vst.msk [vmem:[#allocation0] sm:$0x1] %vm26, %v25
    %s29 = sshll.u32 1, 1
    %s30 = ssub.s32 %s29, 1
    %v32 = vld [vmem:[#allocation0] sm:%s30]
    %s33 = sshll.u32 1, 1
    %s34 = ssub.s32 %s33, 1
    %35 = vst [vmem:[%s1] sm:%s34] %v32

// kernel: trans_base_forward.1
$region0: #{trans_base_forward.1}
  #allocation0 [shape = 'u32[]', space=smem, size = 0x4, offset = 0x4, fixed_abs, tag = 'smem constant byte address 0x4 - core index']
  #allocation1 [shape = 'u32[144,128]{1,0:T(1,128)}', space=vmem, size = 0x12000, scoped, tag = 'internal scratch']
  %s0 = inlined_call_operand.vmem [shape: f32[8,48], index: 0, kind: input, shape index: {}]
  %s1 = inlined_call_operand.vmem [shape: f32[1,48], index: 1, kind: input, shape index: {}]
  %s2 = inlined_call_operand.vmem [shape: f32[1,48], index: 2, kind: input, shape index: {}]
  %s3 = inlined_call_operand.vmem [shape: f32[32,32], index: 3, kind: input, shape index: {}]
  %s4 = inlined_call_operand.vmem [shape: bf16[12,128], index: 4, kind: input, shape index: {}]
  %s5 = inlined_call_operand.vmem [shape: f32[1,128], index: 5, kind: input, shape index: {}]
  %s6 = inlined_call_operand.vmem [shape: bf16[4,8,32], index: 6, kind: input, shape index: {}]
  %s7 = inlined_call_operand.vmem [shape: f32[1,32], index: 7, kind: input, shape index: {}]
  %s8 = inlined_call_operand.vmem [shape: f32[1,32], index: 8, kind: input, shape index: {}]
  %s9 = inlined_call_operand.vmem [shape: f32[1,32], index: 9, kind: input, shape index: {}]
  %s10 = inlined_call_operand.vmem [shape: bf16[32,8], index: 10, kind: input, shape index: {}]
  %s11 = inlined_call_operand.vmem [shape: f32[1,8], index: 11, kind: input, shape index: {}]
  %s12 = inlined_call_operand.vmem [shape: bf16[8,32], index: 12, kind: input, shape index: {}]
  %s13 = inlined_call_operand.vmem [shape: f32[1,32], index: 13, kind: input, shape index: {}]
  %s14 = inlined_call_operand.vmem [shape: f32[1,32], index: 14, kind: input, shape index: {}]
  %s15 = inlined_call_operand.vmem [shape: f32[1,32], index: 15, kind: input, shape index: {}]
  %s16 = inlined_call_operand.hbm [shape: f32[8,32], index: 16, kind: output, shape index: {}]
  %s17 = sld [smem:[#allocation0]]
  $region74: #{trans_base_forward.1} parent=0
    _
  %s19 = ssub.s32 1, %s17
  %s20 = scalar_select 0, %s19, %s17
  $region1: #{trans_base_forward.1} parent=0
    #allocation2 [shape = 'u8[4096]{0}', space=vmem, size = 0x1000, scoped, tag = 'output window, operand 0, single buffered']
    #allocation3 [shape = 's32[1]{0}', space=sflag, size = 0x4, scoped, tag = 'scoped memory for trans_base_forward.1']
    %21 = vsyncpa [#allocation3], 0
    // Predicated region
    $region2: #{trans_base_forward.1} parent=1 // pred_check
      _
    $region3: #{trans_base_forward.1} parent=1 // pred_check_branch
      %23 = sbr.rel (0) target = $region5
    $region4: #{trans_base_forward.1} parent=1 // pred_region
      _
    $region5: #{trans_base_forward.1} parent=1 // pred_fallthru
      _
    // Predicated region
    $region6: #{trans_base_forward.1} parent=1 // pred_check
      _
    $region7: #{trans_base_forward.1} parent=1 // pred_check_branch
      %25 = sbr.rel (0) target = $region9
    $region8: #{trans_base_forward.1} parent=1 // pred_region
      _
    $region9: #{trans_base_forward.1} parent=1 // pred_fallthru
      _
    // Predicated region
    $region10: #{trans_base_forward.1} parent=1 // pred_check
      _
    $region11: #{trans_base_forward.1} parent=1 // pred_check_branch
      %27 = sbr.rel (0) target = $region13
    $region12: #{trans_base_forward.1} parent=1 // pred_region
      _
    $region13: #{trans_base_forward.1} parent=1 // pred_fallthru
      _
    // Predicated region
    $region14: #{trans_base_forward.1} parent=1 // pred_check
      _
    $region15: #{trans_base_forward.1} parent=1 // pred_check_branch
      %29 = sbr.rel (0) target = $region17
    $region16: #{trans_base_forward.1} parent=1 // pred_region
      _
    $region17: #{trans_base_forward.1} parent=1 // pred_fallthru
      _
    // Predicated region
    $region18: #{trans_base_forward.1} parent=1 // pred_check
      _
    $region19: #{trans_base_forward.1} parent=1 // pred_check_branch
      %31 = sbr.rel (0) target = $region21
    $region20: #{trans_base_forward.1} parent=1 // pred_region
      _
    $region21: #{trans_base_forward.1} parent=1 // pred_fallthru
      _
    // Predicated region
    $region22: #{trans_base_forward.1} parent=1 // pred_check
      _
    $region23: #{trans_base_forward.1} parent=1 // pred_check_branch
      %33 = sbr.rel (0) target = $region25
    $region24: #{trans_base_forward.1} parent=1 // pred_region
      _
    $region25: #{trans_base_forward.1} parent=1 // pred_fallthru
      _
    // Predicated region
    $region26: #{trans_base_forward.1} parent=1 // pred_check
      _
    $region27: #{trans_base_forward.1} parent=1 // pred_check_branch
      %35 = sbr.rel (0) target = $region29
    $region28: #{trans_base_forward.1} parent=1 // pred_region
      _
    $region29: #{trans_base_forward.1} parent=1 // pred_fallthru
      _
    // Predicated region
    $region30: #{trans_base_forward.1} parent=1 // pred_check
      _
    $region31: #{trans_base_forward.1} parent=1 // pred_check_branch
      %37 = sbr.rel (0) target = $region33
    $region32: #{trans_base_forward.1} parent=1 // pred_region
      _
    $region33: #{trans_base_forward.1} parent=1 // pred_fallthru
      _
    // Predicated region
    $region34: #{trans_base_forward.1} parent=1 // pred_check
      _
    $region35: #{trans_base_forward.1} parent=1 // pred_check_branch
      %39 = sbr.rel (0) target = $region37
    $region36: #{trans_base_forward.1} parent=1 // pred_region
      _
    $region37: #{trans_base_forward.1} parent=1 // pred_fallthru
      _
    // Predicated region
    $region38: #{trans_base_forward.1} parent=1 // pred_check
      _
    $region39: #{trans_base_forward.1} parent=1 // pred_check_branch
      %41 = sbr.rel (0) target = $region41
    $region40: #{trans_base_forward.1} parent=1 // pred_region
      _
    $region41: #{trans_base_forward.1} parent=1 // pred_fallthru
      _
    // Predicated region
    $region42: #{trans_base_forward.1} parent=1 // pred_check
      _
    $region43: #{trans_base_forward.1} parent=1 // pred_check_branch
      %43 = sbr.rel (0) target = $region45
    $region44: #{trans_base_forward.1} parent=1 // pred_region
      _
    $region45: #{trans_base_forward.1} parent=1 // pred_fallthru
      _
    // Predicated region
    $region46: #{trans_base_forward.1} parent=1 // pred_check
      _
    $region47: #{trans_base_forward.1} parent=1 // pred_check_branch
      %45 = sbr.rel (0) target = $region49
    $region48: #{trans_base_forward.1} parent=1 // pred_region
      _
    $region49: #{trans_base_forward.1} parent=1 // pred_fallthru
      _
    // Predicated region
    $region50: #{trans_base_forward.1} parent=1 // pred_check
      _
    $region51: #{trans_base_forward.1} parent=1 // pred_check_branch
      %47 = sbr.rel (0) target = $region53
    $region52: #{trans_base_forward.1} parent=1 // pred_region
      _
    $region53: #{trans_base_forward.1} parent=1 // pred_fallthru
      _
    // Predicated region
    $region54: #{trans_base_forward.1} parent=1 // pred_check
      _
    $region55: #{trans_base_forward.1} parent=1 // pred_check_branch
      %49 = sbr.rel (0) target = $region57
    $region56: #{trans_base_forward.1} parent=1 // pred_region
      _
    $region57: #{trans_base_forward.1} parent=1 // pred_fallthru
      _
    // Predicated region
    $region58: #{trans_base_forward.1} parent=1 // pred_check
      _
    $region59: #{trans_base_forward.1} parent=1 // pred_check_branch
      %51 = sbr.rel (0) target = $region61
    $region60: #{trans_base_forward.1} parent=1 // pred_region
      _
    $region61: #{trans_base_forward.1} parent=1 // pred_fallthru
      _
    // Predicated region
    $region62: #{trans_base_forward.1} parent=1 // pred_check
      _
    $region63: #{trans_base_forward.1} parent=1 // pred_check_branch
      %53 = sbr.rel (0) target = $region65
    $region64: #{trans_base_forward.1} parent=1 // pred_region
      _
    $region65: #{trans_base_forward.1} parent=1 // pred_fallthru
      _
    %v55 = vld [vmem:[%s0] sm:$0xff]
    %v56 = vld [vmem:[%s1] sm:$0x1]
    %v57 = vld [vmem:[%s2] sm:$0x1]
    %vm58 = vcmask 392192
    %v59 = vsel %vm58, %v55, 0.0
    %60 = vadd.xlane.f32.xlu0 %v59
    %v61 = vpop.xlane.xlu0 %60
    %v62 = vrcp.pop 48.0
    %v63 = vmul.f32 %v61, %v62
    %v64 = vsub.f32 %v55, %v63
    %v65 = vmul.f32 %v64, %v64
    %v66 = vsel %vm58, %v65, 0.0
    %67 = vadd.xlane.f32.xlu0 %v66
    %v68 = vpop.xlane.xlu0 %67
    %v69 = vmul.f32 %v68, %v62
    %v70 = vadd.f32 %v69, 1e-05
    %v71 = vrsqrt.pop %v70
    %v72 = vmul.f32 %v64, %v71
    %v74 = vlaneseq
    %v75 = vshrl.u32 %v74, 7
    %v76 = vsub.s32 0, %v75
    %v77 = vrot.slane %v56, %v76
    %v79 = vmul.f32 %v72, %v77
    %v81 = vlaneseq
    %v82 = vshrl.u32 %v81, 7
    %v83 = vsub.s32 0, %v82
    %v84 = vrot.slane %v57, %v83
    %v86 = vadd.f32 %v79, %v84
    %88 = vrot.lane.b32.xlu0 %v86, 116
    %v89 = vpop.permute.xlu0 %88
    %91 = vrot.lane.b32.xlu0 %v86, 104
    %v92 = vpop.permute.xlu0 %91
    %94 = vrot.lane.b32.xlu0 %v86, 92
    %v95 = vpop.permute.xlu0 %94
    %v97 = vpack.c.bf16 %v89, %v86
    %v98 = vpack.c.bf16 %v95, %v92
    %v99 = vld [vmem:[%s4] sm:$0xf]
    %v100 = vld [vmem:[%s4 + $0x4] sm:$0x3]
    %v101 = vld [vmem:[%s5] sm:$0x1]
    %v103 = vlaneseq
    %v104 = vshrl.u32 %v103, 7
    %v105 = vsub.s32 0, %v104
    %v106 = vrot.slane %v101, %v105
    %v110 = vunpack.c.l.b16 %v99
    %v111 = vunpack.c.l.b16 %v100
    %v112 = vpack.c.b16 %v111, %v110
    %vm113 = vcmask 97280
    %v115 = vsel %vm113, %v97, 0
    %v118 = vsel %vm113, %v98, 0
    %vm120 = vcmask 1045504
    %v122 = vsel %vm120, %v112, 0
    %124 = vmatprep.subr.bf16.mxu0 0
    %125 = vmatpush1.bf16.msra.mxu0 0
    %126 = vmatprep.subr.bf16.mxu0 0
    %127 = vmatpush1.bf16.msra.mxu0 0
    %128 = vmatprep.subr.bf16.mxu0 0
    %129 = vmatpush1.bf16.msra.mxu0 0
    %130 = vmatprep.subr.bf16.mxu0 0
    %131 = vmatpush1.bf16.msra.mxu0 0
    %132 = vmatprep.subr.bf16.mxu0 0
    %133 = vmatpush1.bf16.msra.mxu0 0
    %134 = vmatprep.subr.bf16.mxu0 0
    %135 = vmatpush1.bf16.msra.mxu0 0
    %136 = vmatprep.subr.bf16.mxu0 0
    %137 = vmatpush1.bf16.msra.mxu0 0
    %138 = vmatprep.subr.bf16.mxu0 0
    %139 = vmatpush1.bf16.msra.mxu0 %v122
    %140 = vmatprep.subr.bf16.mxu0 0
    %141 = vmatpush2.bf16.msra.mxu0 0
    %142 = vmatprep.subr.bf16.mxu0 0
    %143 = vmatpush2.bf16.msra.mxu0 0
    %144 = vmatprep.subr.bf16.mxu0 0
    %145 = vmatpush2.bf16.msra.mxu0 0
    %146 = vmatprep.subr.bf16.mxu0 0
    %147 = vmatpush2.bf16.msra.mxu0 0
    %148 = vmatprep.subr.bf16.mxu0 0
    %149 = vmatpush2.bf16.msra.mxu0 0
    %150 = vmatprep.subr.bf16.mxu0 0
    %151 = vmatpush2.bf16.msra.mxu0 0
    %152 = vmatprep.subr.bf16.mxu0 0
    %153 = vmatpush2.bf16.msra.mxu0 0
    %154 = vmatprep.subr.bf16.mxu0 0
    %155 = vmatpush2.bf16.msra.mxu0 0
    %156 = vmatprep.mubr.bf16.mxu0 0
    %157 = vmatmul.mubr.bf16.gmra.mxu0 %v115
    %v158 = vpop.f32.mrf.mxu0
    %v159 = vadd.f32 %v106, %v158
    %v160 = vpop.f32.mrf.mxu0
    %v161 = vpop.f32.mrf.mxu0
    %v162 = vadd.f32 %v106, %v161
    %v163 = vpop.f32.mrf.mxu0
    %164 = vmatprep.mubr.bf16.mxu0 0
    %165 = vmatmul.mubr.bf16.gmra.mxu0 %v118
    %v166 = vpop.f32.mrf.mxu0
    %v167 = vadd.f32 %v106, %v166
    %v168 = vpop.f32.mrf.mxu0
    %v169 = vpop.f32.mrf.mxu0
    %v170 = vadd.f32 %v106, %v169
    %v171 = vpop.f32.mrf.mxu0
    %172 = vdwg.mxu0
    %v173 = vpack.c.bf16 %v162, %v159
    %v174 = vpack.c.bf16 %v170, %v167
    %177 = vrot.lane.b32.xlu0 %v173, 120
    %v178 = vpop.permute.xlu0 %177
    %179 = vrot.lane.b32.xlu0 %v174, 120
    %v180 = vpop.permute.xlu0 %179
    %181 = vrot.lane.b32.xlu0 %v173, 112
    %v182 = vpop.permute.xlu0 %181
    %183 = vrot.lane.b32.xlu0 %v174, 112
    %v184 = vpop.permute.xlu0 %183
    %185 = vrot.lane.b32.xlu0 %v173, 104
    %v186 = vpop.permute.xlu0 %185
    %187 = vrot.lane.b32.xlu0 %v174, 104
    %v188 = vpop.permute.xlu0 %187
    %189 = vrot.lane.b32.xlu0 %v173, 96
    %v190 = vpop.permute.xlu0 %189
    %191 = vrot.lane.b32.xlu0 %v174, 96
    %v192 = vpop.permute.xlu0 %191
    %193 = vrot.lane.b32.xlu0 %v173, 64
    %v194 = vpop.permute.xlu0 %193
    %195 = vrot.lane.b32.xlu0 %v174, 64
    %v196 = vpop.permute.xlu0 %195
    %vm197 = vcmask 64512
    %v199 = vsel %vm197, %v190, 0
    %v202 = vsel %vm197, %v192, 0
    %v205 = vsel %vm197, %v194, 0
    %v208 = vsel %vm197, %v196, 0
    %210 = vmatprep.subr.bf16.mxu0 0
    %211 = vmatpush1.bf16.xpose.msra.mxu0 0
    %212 = vmatprep.subr.bf16.mxu0 0
    %213 = vmatpush1.bf16.xpose.msra.mxu0 0
    %214 = vmatprep.subr.bf16.mxu0 0
    %215 = vmatpush1.bf16.xpose.msra.mxu0 0
    %216 = vmatprep.subr.bf16.mxu0 0
    %217 = vmatpush1.bf16.xpose.msra.mxu0 0
    %218 = vmatprep.subr.bf16.mxu0 0
    %219 = vmatpush1.bf16.xpose.msra.mxu0 0
    %220 = vmatprep.subr.bf16.mxu0 0
    %221 = vmatpush1.bf16.xpose.msra.mxu0 0
    %222 = vmatprep.subr.bf16.mxu0 0
    %223 = vmatpush1.bf16.xpose.msra.mxu0 %v208
    %224 = vmatprep.subr.bf16.mxu0 0
    %225 = vmatpush1.bf16.xpose.msra.mxu0 %v205
    %226 = vmatprep.subr.bf16.mxu0 0
    %227 = vmatpush2.bf16.xpose.msra.mxu0 0
    %228 = vmatprep.subr.bf16.mxu0 0
    %229 = vmatpush2.bf16.xpose.msra.mxu0 0
    %230 = vmatprep.subr.bf16.mxu0 0
    %231 = vmatpush2.bf16.xpose.msra.mxu0 0
    %232 = vmatprep.subr.bf16.mxu0 0
    %233 = vmatpush2.bf16.xpose.msra.mxu0 0
    %234 = vmatprep.subr.bf16.mxu0 0
    %235 = vmatpush2.bf16.xpose.msra.mxu0 0
    %236 = vmatprep.subr.bf16.mxu0 0
    %237 = vmatpush2.bf16.xpose.msra.mxu0 0
    %238 = vmatprep.subr.bf16.mxu0 0
    %239 = vmatpush2.bf16.xpose.msra.mxu0 0
    %240 = vmatprep.subr.bf16.mxu0 0
    %241 = vmatpush2.bf16.xpose.msra.mxu0 0
    %242 = vmatprep.mubr.bf16.mxu0 0
    %243 = vmatmul.mubr.bf16.gmra.mxu0 %v199
    %v244 = vpop.f32.mrf.mxu0
    %v245 = vadd.f32 0.0, %v244
    %v246 = vpop.f32.mrf.mxu0
    %v247 = vpop.f32.mrf.mxu0
    %v248 = vadd.f32 0.0, %v247
    %v249 = vpop.f32.mrf.mxu0
    %250 = vmatprep.mubr.bf16.mxu0 0
    %251 = vmatmul.mubr.bf16.gmra.mxu0 %v202
    %v252 = vpop.f32.mrf.mxu0
    %v253 = vadd.f32 0.0, %v252
    %v254 = vpop.f32.mrf.mxu0
    %v255 = vpop.f32.mrf.mxu0
    %v256 = vadd.f32 0.0, %v255
    %v257 = vpop.f32.mrf.mxu0
    %258 = vdwg.mxu0
    %259 = vrot.lane.b32.xlu0 %v178, 96
    %v260 = vpop.permute.xlu0 %259
    %261 = vrot.lane.b32.xlu0 %v180, 96
    %v262 = vpop.permute.xlu0 %261
    %263 = vrot.lane.b32.xlu0 %v178, 64
    %v264 = vpop.permute.xlu0 %263
    %265 = vrot.lane.b32.xlu0 %v180, 64
    %v266 = vpop.permute.xlu0 %265
    %v268 = vsel %vm197, %v260, 0
    %v271 = vsel %vm197, %v262, 0
    %v274 = vsel %vm197, %v264, 0
    %v277 = vsel %vm197, %v266, 0
    %279 = vmatprep.subr.bf16.mxu0 0
    %280 = vmatpush1.bf16.xpose.msra.mxu0 0
    %281 = vmatprep.subr.bf16.mxu0 0
    %282 = vmatpush1.bf16.xpose.msra.mxu0 0
    %283 = vmatprep.subr.bf16.mxu0 0
    %284 = vmatpush1.bf16.xpose.msra.mxu0 0
    %285 = vmatprep.subr.bf16.mxu0 0
    %286 = vmatpush1.bf16.xpose.msra.mxu0 0
    %287 = vmatprep.subr.bf16.mxu0 0
    %288 = vmatpush1.bf16.xpose.msra.mxu0 0
    %289 = vmatprep.subr.bf16.mxu0 0
    %290 = vmatpush1.bf16.xpose.msra.mxu0 0
    %291 = vmatprep.subr.bf16.mxu0 0
    %292 = vmatpush1.bf16.xpose.msra.mxu0 %v277
    %293 = vmatprep.subr.bf16.mxu0 0
    %294 = vmatpush1.bf16.xpose.msra.mxu0 %v274
    %295 = vmatprep.subr.bf16.mxu0 0
    %296 = vmatpush2.bf16.xpose.msra.mxu0 0
    %297 = vmatprep.subr.bf16.mxu0 0
    %298 = vmatpush2.bf16.xpose.msra.mxu0 0
    %299 = vmatprep.subr.bf16.mxu0 0
    %300 = vmatpush2.bf16.xpose.msra.mxu0 0
    %301 = vmatprep.subr.bf16.mxu0 0
    %302 = vmatpush2.bf16.xpose.msra.mxu0 0
    %303 = vmatprep.subr.bf16.mxu0 0
    %304 = vmatpush2.bf16.xpose.msra.mxu0 0
    %305 = vmatprep.subr.bf16.mxu0 0
    %306 = vmatpush2.bf16.xpose.msra.mxu0 0
    %307 = vmatprep.subr.bf16.mxu0 0
    %308 = vmatpush2.bf16.xpose.msra.mxu0 0
    %309 = vmatprep.subr.bf16.mxu0 0
    %310 = vmatpush2.bf16.xpose.msra.mxu0 0
    %311 = vmatprep.mubr.bf16.mxu0 0
    %312 = vmatmul.mubr.bf16.gmra.mxu0 %v268
    %v313 = vpop.f32.mrf.mxu0
    %v314 = vadd.f32 0.0, %v313
    %v315 = vpop.f32.mrf.mxu0
    %v316 = vpop.f32.mrf.mxu0
    %v317 = vadd.f32 0.0, %v316
    %v318 = vpop.f32.mrf.mxu0
    %319 = vmatprep.mubr.bf16.mxu0 0
    %320 = vmatmul.mubr.bf16.gmra.mxu0 %v271
    %v321 = vpop.f32.mrf.mxu0
    %v322 = vadd.f32 0.0, %v321
    %v323 = vpop.f32.mrf.mxu0
    %v324 = vpop.f32.mrf.mxu0
    %v325 = vadd.f32 0.0, %v324
    %v326 = vpop.f32.mrf.mxu0
    %327 = vdwg.mxu0
    %328 = vrot.lane.b32.xlu0 %v182, 96
    %v329 = vpop.permute.xlu0 %328
    %330 = vrot.lane.b32.xlu0 %v184, 96
    %v331 = vpop.permute.xlu0 %330
    %332 = vrot.lane.b32.xlu0 %v182, 64
    %v333 = vpop.permute.xlu0 %332
    %334 = vrot.lane.b32.xlu0 %v184, 64
    %v335 = vpop.permute.xlu0 %334
    %v337 = vsel %vm197, %v329, 0
    %v340 = vsel %vm197, %v331, 0
    %v343 = vsel %vm197, %v333, 0
    %v346 = vsel %vm197, %v335, 0
    %348 = vmatprep.subr.bf16.mxu0 0
    %349 = vmatpush1.bf16.xpose.msra.mxu0 0
    %350 = vmatprep.subr.bf16.mxu0 0
    %351 = vmatpush1.bf16.xpose.msra.mxu0 0
    %352 = vmatprep.subr.bf16.mxu0 0
    %353 = vmatpush1.bf16.xpose.msra.mxu0 0
    %354 = vmatprep.subr.bf16.mxu0 0
    %355 = vmatpush1.bf16.xpose.msra.mxu0 0
    %356 = vmatprep.subr.bf16.mxu0 0
    %357 = vmatpush1.bf16.xpose.msra.mxu0 0
    %358 = vmatprep.subr.bf16.mxu0 0
    %359 = vmatpush1.bf16.xpose.msra.mxu0 0
    %360 = vmatprep.subr.bf16.mxu0 0
    %361 = vmatpush1.bf16.xpose.msra.mxu0 %v346
    %362 = vmatprep.subr.bf16.mxu0 0
    %363 = vmatpush1.bf16.xpose.msra.mxu0 %v343
    %364 = vmatprep.subr.bf16.mxu0 0
    %365 = vmatpush2.bf16.xpose.msra.mxu0 0
    %366 = vmatprep.subr.bf16.mxu0 0
    %367 = vmatpush2.bf16.xpose.msra.mxu0 0
    %368 = vmatprep.subr.bf16.mxu0 0
    %369 = vmatpush2.bf16.xpose.msra.mxu0 0
    %370 = vmatprep.subr.bf16.mxu0 0
    %371 = vmatpush2.bf16.xpose.msra.mxu0 0
    %372 = vmatprep.subr.bf16.mxu0 0
    %373 = vmatpush2.bf16.xpose.msra.mxu0 0
    %374 = vmatprep.subr.bf16.mxu0 0
    %375 = vmatpush2.bf16.xpose.msra.mxu0 0
    %376 = vmatprep.subr.bf16.mxu0 0
    %377 = vmatpush2.bf16.xpose.msra.mxu0 0
    %378 = vmatprep.subr.bf16.mxu0 0
    %379 = vmatpush2.bf16.xpose.msra.mxu0 0
    %380 = vmatprep.mubr.bf16.mxu0 0
    %381 = vmatmul.mubr.bf16.gmra.mxu0 %v337
    %v382 = vpop.f32.mrf.mxu0
    %v383 = vadd.f32 0.0, %v382
    %v384 = vpop.f32.mrf.mxu0
    %v385 = vpop.f32.mrf.mxu0
    %v386 = vadd.f32 0.0, %v385
    %v387 = vpop.f32.mrf.mxu0
    %388 = vmatprep.mubr.bf16.mxu0 0
    %389 = vmatmul.mubr.bf16.gmra.mxu0 %v340
    %v390 = vpop.f32.mrf.mxu0
    %v391 = vadd.f32 0.0, %v390
    %v392 = vpop.f32.mrf.mxu0
    %v393 = vpop.f32.mrf.mxu0
    %v394 = vadd.f32 0.0, %v393
    %v395 = vpop.f32.mrf.mxu0
    %396 = vdwg.mxu0
    %397 = vrot.lane.b32.xlu0 %v186, 96
    %v398 = vpop.permute.xlu0 %397
    %399 = vrot.lane.b32.xlu0 %v188, 96
    %v400 = vpop.permute.xlu0 %399
    %401 = vrot.lane.b32.xlu0 %v186, 64
    %v402 = vpop.permute.xlu0 %401
    %403 = vrot.lane.b32.xlu0 %v188, 64
    %v404 = vpop.permute.xlu0 %403
    %v406 = vsel %vm197, %v398, 0
    %v409 = vsel %vm197, %v400, 0
    %v412 = vsel %vm197, %v402, 0
    %v415 = vsel %vm197, %v404, 0
    %417 = vmatprep.subr.bf16.mxu0 0
    %418 = vmatpush1.bf16.xpose.msra.mxu0 0
    %419 = vmatprep.subr.bf16.mxu0 0
    %420 = vmatpush1.bf16.xpose.msra.mxu0 0
    %421 = vmatprep.subr.bf16.mxu0 0
    %422 = vmatpush1.bf16.xpose.msra.mxu0 0
    %423 = vmatprep.subr.bf16.mxu0 0
    %424 = vmatpush1.bf16.xpose.msra.mxu0 0
    %425 = vmatprep.subr.bf16.mxu0 0
    %426 = vmatpush1.bf16.xpose.msra.mxu0 0
    %427 = vmatprep.subr.bf16.mxu0 0
    %428 = vmatpush1.bf16.xpose.msra.mxu0 0
    %429 = vmatprep.subr.bf16.mxu0 0
    %430 = vmatpush1.bf16.xpose.msra.mxu0 %v415
    %431 = vmatprep.subr.bf16.mxu0 0
    %432 = vmatpush1.bf16.xpose.msra.mxu0 %v412
    %433 = vmatprep.subr.bf16.mxu0 0
    %434 = vmatpush2.bf16.xpose.msra.mxu0 0
    %435 = vmatprep.subr.bf16.mxu0 0
    %436 = vmatpush2.bf16.xpose.msra.mxu0 0
    %437 = vmatprep.subr.bf16.mxu0 0
    %438 = vmatpush2.bf16.xpose.msra.mxu0 0
    %439 = vmatprep.subr.bf16.mxu0 0
    %440 = vmatpush2.bf16.xpose.msra.mxu0 0
    %441 = vmatprep.subr.bf16.mxu0 0
    %442 = vmatpush2.bf16.xpose.msra.mxu0 0
    %443 = vmatprep.subr.bf16.mxu0 0
    %444 = vmatpush2.bf16.xpose.msra.mxu0 0
    %445 = vmatprep.subr.bf16.mxu0 0
    %446 = vmatpush2.bf16.xpose.msra.mxu0 0
    %447 = vmatprep.subr.bf16.mxu0 0
    %448 = vmatpush2.bf16.xpose.msra.mxu0 0
    %449 = vmatprep.mubr.bf16.mxu0 0
    %450 = vmatmul.mubr.bf16.gmra.mxu0 %v406
    %v451 = vpop.f32.mrf.mxu0
    %v452 = vadd.f32 0.0, %v451
    %v453 = vpop.f32.mrf.mxu0
    %v454 = vpop.f32.mrf.mxu0
    %v455 = vadd.f32 0.0, %v454
    %v456 = vpop.f32.mrf.mxu0
    %457 = vmatprep.mubr.bf16.mxu0 0
    %458 = vmatmul.mubr.bf16.gmra.mxu0 %v409
    %v459 = vpop.f32.mrf.mxu0
    %v460 = vadd.f32 0.0, %v459
    %v461 = vpop.f32.mrf.mxu0
    %v462 = vpop.f32.mrf.mxu0
    %v463 = vadd.f32 0.0, %v462
    %v464 = vpop.f32.mrf.mxu0
    %465 = vdwg.mxu0
    %v466 = vmul.f32 %v245, 0.35355338
    %v467 = vmul.f32 %v248, 0.35355338
    %v468 = vmul.f32 %v253, 0.35355338
    %v469 = vmul.f32 %v256, 0.35355338
    %v470 = vmul.f32 %v314, 0.35355338
    %v471 = vmul.f32 %v317, 0.35355338
    %v472 = vmul.f32 %v322, 0.35355338
    %v473 = vmul.f32 %v325, 0.35355338
    %v474 = vmul.f32 %v383, 0.35355338
    %v475 = vmul.f32 %v386, 0.35355338
    %v476 = vmul.f32 %v391, 0.35355338
    %v477 = vmul.f32 %v394, 0.35355338
    %v478 = vmul.f32 %v452, 0.35355338
    %v479 = vmul.f32 %v455, 0.35355338
    %v480 = vmul.f32 %v460, 0.35355338
    %v481 = vmul.f32 %v463, 0.35355338
    %v482 = vld [vmem:[%s3] sm:$0xff]
    %v483 = vld [vmem:[%s3 + $0x8] sm:$0xff]
    %v484 = vld [vmem:[%s3 + $0x10] sm:$0xff]
    %v485 = vld [vmem:[%s3 + $0x18] sm:$0xff]
    %v486 = vadd.f32 %v466, %v482
    %v487 = vadd.f32 %v467, %v483
    %v488 = vadd.f32 %v468, %v484
    %v489 = vadd.f32 %v469, %v485
    %v490 = vadd.f32 %v470, %v482
    %v491 = vadd.f32 %v471, %v483
    %v492 = vadd.f32 %v472, %v484
    %v493 = vadd.f32 %v473, %v485
    %v494 = vadd.f32 %v474, %v482
    %v495 = vadd.f32 %v475, %v483
    %v496 = vadd.f32 %v476, %v484
    %v497 = vadd.f32 %v477, %v485
    %v498 = vadd.f32 %v478, %v482
    %v499 = vadd.f32 %v479, %v483
    %v500 = vadd.f32 %v480, %v484
    %v501 = vadd.f32 %v481, %v485
    %vm502 = vcmask 261120
    %v503 = vsel %vm502, %v486, -inf
    %504 = vmax.xlane.f32.xlu0 %v503
    %v505 = vpop.xlane.xlu0 %504
    %v506 = vsel %vm502, %v487, -inf
    %507 = vmax.xlane.f32.xlu0 %v506
    %v508 = vpop.xlane.xlu0 %507
    %v509 = vsel %vm502, %v488, -inf
    %510 = vmax.xlane.f32.xlu0 %v509
    %v511 = vpop.xlane.xlu0 %510
    %v512 = vsel %vm502, %v489, -inf
    %513 = vmax.xlane.f32.xlu0 %v512
    %v514 = vpop.xlane.xlu0 %513
    %v515 = vsel %vm502, %v490, -inf
    %516 = vmax.xlane.f32.xlu0 %v515
    %v517 = vpop.xlane.xlu0 %516
    %v518 = vsel %vm502, %v491, -inf
    %519 = vmax.xlane.f32.xlu0 %v518
    %v520 = vpop.xlane.xlu0 %519
    %v521 = vsel %vm502, %v492, -inf
    %522 = vmax.xlane.f32.xlu0 %v521
    %v523 = vpop.xlane.xlu0 %522
    %v524 = vsel %vm502, %v493, -inf
    %525 = vmax.xlane.f32.xlu0 %v524
    %v526 = vpop.xlane.xlu0 %525
    %v527 = vsel %vm502, %v494, -inf
    %528 = vmax.xlane.f32.xlu0 %v527
    %v529 = vpop.xlane.xlu0 %528
    %v530 = vsel %vm502, %v495, -inf
    %531 = vmax.xlane.f32.xlu0 %v530
    %v532 = vpop.xlane.xlu0 %531
    %v533 = vsel %vm502, %v496, -inf
    %534 = vmax.xlane.f32.xlu0 %v533
    %v535 = vpop.xlane.xlu0 %534
    %v536 = vsel %vm502, %v497, -inf
    %537 = vmax.xlane.f32.xlu0 %v536
    %v538 = vpop.xlane.xlu0 %537
    %v539 = vsel %vm502, %v498, -inf
    %540 = vmax.xlane.f32.xlu0 %v539
    %v541 = vpop.xlane.xlu0 %540
    %v542 = vsel %vm502, %v499, -inf
    %543 = vmax.xlane.f32.xlu0 %v542
    %v544 = vpop.xlane.xlu0 %543
    %v545 = vsel %vm502, %v500, -inf
    %546 = vmax.xlane.f32.xlu0 %v545
    %v547 = vpop.xlane.xlu0 %546
    %v548 = vsel %vm502, %v501, -inf
    %549 = vmax.xlane.f32.xlu0 %v548
    %v550 = vpop.xlane.xlu0 %549
    %v551 = vsub.f32 %v486, %v505
    %v552 = vsub.f32 %v487, %v508
    %v553 = vsub.f32 %v488, %v511
    %v554 = vsub.f32 %v489, %v514
    %v555 = vsub.f32 %v490, %v517
    %v556 = vsub.f32 %v491, %v520
    %v557 = vsub.f32 %v492, %v523
    %v558 = vsub.f32 %v493, %v526
    %v559 = vsub.f32 %v494, %v529
    %v560 = vsub.f32 %v495, %v532
    %v561 = vsub.f32 %v496, %v535
    %v562 = vsub.f32 %v497, %v538
    %v563 = vsub.f32 %v498, %v541
    %v564 = vsub.f32 %v499, %v544
    %v565 = vsub.f32 %v500, %v547
    %v566 = vsub.f32 %v501, %v550
    %v567 = vmul.f32 %v551, 1.442695
    %v568 = vpow.pop %v567
    %v569 = vmul.f32 %v552, 1.442695
    %v570 = vpow.pop %v569
    %v571 = vmul.f32 %v553, 1.442695
    %v572 = vpow.pop %v571
    %v573 = vmul.f32 %v554, 1.442695
    %v574 = vpow.pop %v573
    %v575 = vmul.f32 %v555, 1.442695
    %v576 = vpow.pop %v575
    %v577 = vmul.f32 %v556, 1.442695
    %v578 = vpow.pop %v577
    %v579 = vmul.f32 %v557, 1.442695
    %v580 = vpow.pop %v579
    %v581 = vmul.f32 %v558, 1.442695
    %v582 = vpow.pop %v581
    %v583 = vmul.f32 %v559, 1.442695
    %v584 = vpow.pop %v583
    %v585 = vmul.f32 %v560, 1.442695
    %v586 = vpow.pop %v585
    %v587 = vmul.f32 %v561, 1.442695
    %v588 = vpow.pop %v587
    %v589 = vmul.f32 %v562, 1.442695
    %v590 = vpow.pop %v589
    %v591 = vmul.f32 %v563, 1.442695
    %v592 = vpow.pop %v591
    %v593 = vmul.f32 %v564, 1.442695
    %v594 = vpow.pop %v593
    %v595 = vmul.f32 %v565, 1.442695
    %v596 = vpow.pop %v595
    %v597 = vmul.f32 %v566, 1.442695
    %v598 = vpow.pop %v597
    %v599 = vsel %vm502, %v568, 0.0
    %600 = vadd.xlane.f32.xlu0 %v599
    %v601 = vpop.xlane.xlu0 %600
    %v602 = vsel %vm502, %v570, 0.0
    %603 = vadd.xlane.f32.xlu0 %v602
    %v604 = vpop.xlane.xlu0 %603
    %v605 = vsel %vm502, %v572, 0.0
    %606 = vadd.xlane.f32.xlu0 %v605
    %v607 = vpop.xlane.xlu0 %606
    %v608 = vsel %vm502, %v574, 0.0
    %609 = vadd.xlane.f32.xlu0 %v608
    %v610 = vpop.xlane.xlu0 %609
    %v611 = vsel %vm502, %v576, 0.0
    %612 = vadd.xlane.f32.xlu0 %v611
    %v613 = vpop.xlane.xlu0 %612
    %v614 = vsel %vm502, %v578, 0.0
    %615 = vadd.xlane.f32.xlu0 %v614
    %v616 = vpop.xlane.xlu0 %615
    %v617 = vsel %vm502, %v580, 0.0
    %618 = vadd.xlane.f32.xlu0 %v617
    %v619 = vpop.xlane.xlu0 %618
    %v620 = vsel %vm502, %v582, 0.0
    %621 = vadd.xlane.f32.xlu0 %v620
    %v622 = vpop.xlane.xlu0 %621
    %v623 = vsel %vm502, %v584, 0.0
    %624 = vadd.xlane.f32.xlu0 %v623
    %v625 = vpop.xlane.xlu0 %624
    %v626 = vsel %vm502, %v586, 0.0
    %627 = vadd.xlane.f32.xlu0 %v626
    %v628 = vpop.xlane.xlu0 %627
    %v629 = vsel %vm502, %v588, 0.0
    %630 = vadd.xlane.f32.xlu0 %v629
    %v631 = vpop.xlane.xlu0 %630
    %v632 = vsel %vm502, %v590, 0.0
    %633 = vadd.xlane.f32.xlu0 %v632
    %v634 = vpop.xlane.xlu0 %633
    %v635 = vsel %vm502, %v592, 0.0
    %636 = vadd.xlane.f32.xlu0 %v635
    %v637 = vpop.xlane.xlu0 %636
    %v638 = vsel %vm502, %v594, 0.0
    %639 = vadd.xlane.f32.xlu0 %v638
    %v640 = vpop.xlane.xlu0 %639
    %v641 = vsel %vm502, %v596, 0.0
    %642 = vadd.xlane.f32.xlu0 %v641
    %v643 = vpop.xlane.xlu0 %642
    %v644 = vsel %vm502, %v598, 0.0
    %645 = vadd.xlane.f32.xlu0 %v644
    %v646 = vpop.xlane.xlu0 %645
    %v647 = vrcp.pop %v601
    %v648 = vrcp.pop %v604
    %v649 = vrcp.pop %v607
    %v650 = vrcp.pop %v610
    %v651 = vrcp.pop %v613
    %v652 = vrcp.pop %v616
    %v653 = vrcp.pop %v619
    %v654 = vrcp.pop %v622
    %v655 = vrcp.pop %v625
    %v656 = vrcp.pop %v628
    %v657 = vrcp.pop %v631
    %v658 = vrcp.pop %v634
    %v659 = vrcp.pop %v637
    %v660 = vrcp.pop %v640
    %v661 = vrcp.pop %v643
    %v662 = vrcp.pop %v646
    %v663 = vmul.f32 %v568, %v647
    %v664 = vmul.f32 %v570, %v648
    %v665 = vmul.f32 %v572, %v649
    %v666 = vmul.f32 %v574, %v650
    %v667 = vmul.f32 %v576, %v651
    %v668 = vmul.f32 %v578, %v652
    %v669 = vmul.f32 %v580, %v653
    %v670 = vmul.f32 %v582, %v654
    %v671 = vmul.f32 %v584, %v655
    %v672 = vmul.f32 %v586, %v656
    %v673 = vmul.f32 %v588, %v657
    %v674 = vmul.f32 %v590, %v658
    %v675 = vmul.f32 %v592, %v659
    %v676 = vmul.f32 %v594, %v660
    %v677 = vmul.f32 %v596, %v661
    %v678 = vmul.f32 %v598, %v662
    %v679 = vpack.c.bf16 %v664, %v663
    %v680 = vpack.c.bf16 %v666, %v665
    %v681 = vpack.c.bf16 %v668, %v667
    %v682 = vpack.c.bf16 %v670, %v669
    %v683 = vpack.c.bf16 %v672, %v671
    %v684 = vpack.c.bf16 %v674, %v673
    %v685 = vpack.c.bf16 %v676, %v675
    %v686 = vpack.c.bf16 %v678, %v677
    %687 = vrot.lane.b32.xlu0 %v173, 32
    %v688 = vpop.permute.xlu0 %687
    %689 = vrot.lane.b32.xlu0 %v174, 32
    %v690 = vpop.permute.xlu0 %689
    %v694 = vsel %vm502, %v679, 0
    %v697 = vsel %vm502, %v680, 0
    %699 = vmatprep.subr.bf16.mxu0 0
    %700 = vmatpush1.bf16.msra.mxu0 0
    %701 = vmatprep.subr.bf16.mxu0 0
    %702 = vmatpush1.bf16.msra.mxu0 0
    %703 = vmatprep.subr.bf16.mxu0 0
    %704 = vmatpush1.bf16.msra.mxu0 0
    %705 = vmatprep.subr.bf16.mxu0 0
    %706 = vmatpush1.bf16.msra.mxu0 0
    %707 = vmatprep.subr.bf16.mxu0 0
    %708 = vmatpush1.bf16.msra.mxu0 0
    %709 = vmatprep.subr.bf16.mxu0 0
    %710 = vmatpush1.bf16.msra.mxu0 0
    %711 = vmatprep.subr.bf16.mxu0 0
    %712 = vmatpush1.bf16.msra.mxu0 %v690
    %713 = vmatprep.subr.bf16.mxu0 0
    %714 = vmatpush1.bf16.msra.mxu0 %v688
    %715 = vmatprep.subr.bf16.mxu0 0
    %716 = vmatpush2.bf16.msra.mxu0 0
    %717 = vmatprep.subr.bf16.mxu0 0
    %718 = vmatpush2.bf16.msra.mxu0 0
    %719 = vmatprep.subr.bf16.mxu0 0
    %720 = vmatpush2.bf16.msra.mxu0 0
    %721 = vmatprep.subr.bf16.mxu0 0
    %722 = vmatpush2.bf16.msra.mxu0 0
    %723 = vmatprep.subr.bf16.mxu0 0
    %724 = vmatpush2.bf16.msra.mxu0 0
    %725 = vmatprep.subr.bf16.mxu0 0
    %726 = vmatpush2.bf16.msra.mxu0 0
    %727 = vmatprep.subr.bf16.mxu0 0
    %728 = vmatpush2.bf16.msra.mxu0 0
    %729 = vmatprep.subr.bf16.mxu0 0
    %730 = vmatpush2.bf16.msra.mxu0 0
    %731 = vmatprep.mubr.bf16.mxu0 0
    %732 = vmatmul.mubr.bf16.gmra.mxu0 %v694
    %v733 = vpop.f32.mrf.mxu0
    %v734 = vadd.f32 0.0, %v733
    %v735 = vpop.f32.mrf.mxu0
    %v736 = vpop.f32.mrf.mxu0
    %v737 = vadd.f32 0.0, %v736
    %v738 = vpop.f32.mrf.mxu0
    %739 = vmatprep.mubr.bf16.mxu0 0
    %740 = vmatmul.mubr.bf16.gmra.mxu0 %v697
    %v741 = vpop.f32.mrf.mxu0
    %v742 = vadd.f32 0.0, %v741
    %v743 = vpop.f32.mrf.mxu0
    %v744 = vpop.f32.mrf.mxu0
    %v745 = vadd.f32 0.0, %v744
    %v746 = vpop.f32.mrf.mxu0
    %747 = vdwg.mxu0
    %748 = vrot.lane.b32.xlu0 %v178, 32
    %v749 = vpop.permute.xlu0 %748
    %750 = vrot.lane.b32.xlu0 %v180, 32
    %v751 = vpop.permute.xlu0 %750
    %v755 = vsel %vm502, %v681, 0
    %v758 = vsel %vm502, %v682, 0
    %760 = vmatprep.subr.bf16.mxu0 0
    %761 = vmatpush1.bf16.msra.mxu0 0
    %762 = vmatprep.subr.bf16.mxu0 0
    %763 = vmatpush1.bf16.msra.mxu0 0
    %764 = vmatprep.subr.bf16.mxu0 0
    %765 = vmatpush1.bf16.msra.mxu0 0
    %766 = vmatprep.subr.bf16.mxu0 0
    %767 = vmatpush1.bf16.msra.mxu0 0
    %768 = vmatprep.subr.bf16.mxu0 0
    %769 = vmatpush1.bf16.msra.mxu0 0
    %770 = vmatprep.subr.bf16.mxu0 0
    %771 = vmatpush1.bf16.msra.mxu0 0
    %772 = vmatprep.subr.bf16.mxu0 0
    %773 = vmatpush1.bf16.msra.mxu0 %v751
    %774 = vmatprep.subr.bf16.mxu0 0
    %775 = vmatpush1.bf16.msra.mxu0 %v749
    %776 = vmatprep.subr.bf16.mxu0 0
    %777 = vmatpush2.bf16.msra.mxu0 0
    %778 = vmatprep.subr.bf16.mxu0 0
    %779 = vmatpush2.bf16.msra.mxu0 0
    %780 = vmatprep.subr.bf16.mxu0 0
    %781 = vmatpush2.bf16.msra.mxu0 0
    %782 = vmatprep.subr.bf16.mxu0 0
    %783 = vmatpush2.bf16.msra.mxu0 0
    %784 = vmatprep.subr.bf16.mxu0 0
    %785 = vmatpush2.bf16.msra.mxu0 0
    %786 = vmatprep.subr.bf16.mxu0 0
    %787 = vmatpush2.bf16.msra.mxu0 0
    %788 = vmatprep.subr.bf16.mxu0 0
    %789 = vmatpush2.bf16.msra.mxu0 0
    %790 = vmatprep.subr.bf16.mxu0 0
    %791 = vmatpush2.bf16.msra.mxu0 0
    %792 = vmatprep.mubr.bf16.mxu0 0
    %793 = vmatmul.mubr.bf16.gmra.mxu0 %v755
    %v794 = vpop.f32.mrf.mxu0
    %v795 = vadd.f32 0.0, %v794
    %v796 = vpop.f32.mrf.mxu0
    %v797 = vpop.f32.mrf.mxu0
    %v798 = vadd.f32 0.0, %v797
    %v799 = vpop.f32.mrf.mxu0
    %800 = vmatprep.mubr.bf16.mxu0 0
    %801 = vmatmul.mubr.bf16.gmra.mxu0 %v758
    %v802 = vpop.f32.mrf.mxu0
    %v803 = vadd.f32 0.0, %v802
    %v804 = vpop.f32.mrf.mxu0
    %v805 = vpop.f32.mrf.mxu0
    %v806 = vadd.f32 0.0, %v805
    %v807 = vpop.f32.mrf.mxu0
    %808 = vdwg.mxu0
    %809 = vrot.lane.b32.xlu0 %v182, 32
    %v810 = vpop.permute.xlu0 %809
    %811 = vrot.lane.b32.xlu0 %v184, 32
    %v812 = vpop.permute.xlu0 %811
    %v816 = vsel %vm502, %v683, 0
    %v819 = vsel %vm502, %v684, 0
    %821 = vmatprep.subr.bf16.mxu0 0
    %822 = vmatpush1.bf16.msra.mxu0 0
    %823 = vmatprep.subr.bf16.mxu0 0
    %824 = vmatpush1.bf16.msra.mxu0 0
    %825 = vmatprep.subr.bf16.mxu0 0
    %826 = vmatpush1.bf16.msra.mxu0 0
    %827 = vmatprep.subr.bf16.mxu0 0
    %828 = vmatpush1.bf16.msra.mxu0 0
    %829 = vmatprep.subr.bf16.mxu0 0
    %830 = vmatpush1.bf16.msra.mxu0 0
    %831 = vmatprep.subr.bf16.mxu0 0
    %832 = vmatpush1.bf16.msra.mxu0 0
    %833 = vmatprep.subr.bf16.mxu0 0
    %834 = vmatpush1.bf16.msra.mxu0 %v812
    %835 = vmatprep.subr.bf16.mxu0 0
    %836 = vmatpush1.bf16.msra.mxu0 %v810
    %837 = vmatprep.subr.bf16.mxu0 0
    %838 = vmatpush2.bf16.msra.mxu0 0
    %839 = vmatprep.subr.bf16.mxu0 0
    %840 = vmatpush2.bf16.msra.mxu0 0
    %841 = vmatprep.subr.bf16.mxu0 0
    %842 = vmatpush2.bf16.msra.mxu0 0
    %843 = vmatprep.subr.bf16.mxu0 0
    %844 = vmatpush2.bf16.msra.mxu0 0
    %845 = vmatprep.subr.bf16.mxu0 0
    %846 = vmatpush2.bf16.msra.mxu0 0
    %847 = vmatprep.subr.bf16.mxu0 0
    %848 = vmatpush2.bf16.msra.mxu0 0
    %849 = vmatprep.subr.bf16.mxu0 0
    %850 = vmatpush2.bf16.msra.mxu0 0
    %851 = vmatprep.subr.bf16.mxu0 0
    %852 = vmatpush2.bf16.msra.mxu0 0
    %853 = vmatprep.mubr.bf16.mxu0 0
    %854 = vmatmul.mubr.bf16.gmra.mxu0 %v816
    %v855 = vpop.f32.mrf.mxu0
    %v856 = vadd.f32 0.0, %v855
    %v857 = vpop.f32.mrf.mxu0
    %v858 = vpop.f32.mrf.mxu0
    %v859 = vadd.f32 0.0, %v858
    %v860 = vpop.f32.mrf.mxu0
    %861 = vmatprep.mubr.bf16.mxu0 0
    %862 = vmatmul.mubr.bf16.gmra.mxu0 %v819
    %v863 = vpop.f32.mrf.mxu0
    %v864 = vadd.f32 0.0, %v863
    %v865 = vpop.f32.mrf.mxu0
    %v866 = vpop.f32.mrf.mxu0
    %v867 = vadd.f32 0.0, %v866
    %v868 = vpop.f32.mrf.mxu0
    %869 = vdwg.mxu0
    %870 = vrot.lane.b32.xlu0 %v186, 32
    %v871 = vpop.permute.xlu0 %870
    %872 = vrot.lane.b32.xlu0 %v188, 32
    %v873 = vpop.permute.xlu0 %872
    %v877 = vsel %vm502, %v685, 0
    %v880 = vsel %vm502, %v686, 0
    %882 = vmatprep.subr.bf16.mxu0 0
    %883 = vmatpush1.bf16.msra.mxu0 0
    %884 = vmatprep.subr.bf16.mxu0 0
    %885 = vmatpush1.bf16.msra.mxu0 0
    %886 = vmatprep.subr.bf16.mxu0 0
    %887 = vmatpush1.bf16.msra.mxu0 0
    %888 = vmatprep.subr.bf16.mxu0 0
    %889 = vmatpush1.bf16.msra.mxu0 0
    %890 = vmatprep.subr.bf16.mxu0 0
    %891 = vmatpush1.bf16.msra.mxu0 0
    %892 = vmatprep.subr.bf16.mxu0 0
    %893 = vmatpush1.bf16.msra.mxu0 0
    %894 = vmatprep.subr.bf16.mxu0 0
    %895 = vmatpush1.bf16.msra.mxu0 %v873
    %896 = vmatprep.subr.bf16.mxu0 0
    %897 = vmatpush1.bf16.msra.mxu0 %v871
    %898 = vmatprep.subr.bf16.mxu0 0
    %899 = vmatpush2.bf16.msra.mxu0 0
    %900 = vmatprep.subr.bf16.mxu0 0
    %901 = vmatpush2.bf16.msra.mxu0 0
    %902 = vmatprep.subr.bf16.mxu0 0
    %903 = vmatpush2.bf16.msra.mxu0 0
    %904 = vmatprep.subr.bf16.mxu0 0
    %905 = vmatpush2.bf16.msra.mxu0 0
    %906 = vmatprep.subr.bf16.mxu0 0
    %907 = vmatpush2.bf16.msra.mxu0 0
    %908 = vmatprep.subr.bf16.mxu0 0
    %909 = vmatpush2.bf16.msra.mxu0 0
    %910 = vmatprep.subr.bf16.mxu0 0
    %911 = vmatpush2.bf16.msra.mxu0 0
    %912 = vmatprep.subr.bf16.mxu0 0
    %913 = vmatpush2.bf16.msra.mxu0 0
    %914 = vmatprep.mubr.bf16.mxu0 0
    %915 = vmatmul.mubr.bf16.gmra.mxu0 %v877
    %v916 = vpop.f32.mrf.mxu0
    %v917 = vadd.f32 0.0, %v916
    %v918 = vpop.f32.mrf.mxu0
    %v919 = vpop.f32.mrf.mxu0
    %v920 = vadd.f32 0.0, %v919
    %v921 = vpop.f32.mrf.mxu0
    %922 = vmatprep.mubr.bf16.mxu0 0
    %923 = vmatmul.mubr.bf16.gmra.mxu0 %v880
    %v924 = vpop.f32.mrf.mxu0
    %v925 = vadd.f32 0.0, %v924
    %v926 = vpop.f32.mrf.mxu0
    %v927 = vpop.f32.mrf.mxu0
    %v928 = vadd.f32 0.0, %v927
    %v929 = vpop.f32.mrf.mxu0
    %930 = vdwg.mxu0
    %v931 = vpack.c.bf16 %v737, %v734
    %v932 = vpack.c.bf16 %v745, %v742
    %v933 = vpack.c.bf16 %v798, %v795
    %v934 = vpack.c.bf16 %v806, %v803
    %v935 = vpack.c.bf16 %v859, %v856
    %v936 = vpack.c.bf16 %v867, %v864
    %v937 = vpack.c.bf16 %v920, %v917
    %v938 = vpack.c.bf16 %v928, %v925
    %v939 = vld [vmem:[%s6] sm:$0xf]
    %v940 = vld [vmem:[%s6 + $0x4] sm:$0xf]
    %v941 = vld [vmem:[%s6 + $0x8] sm:$0xf]
    %v942 = vld [vmem:[%s6 + $0xc] sm:$0xf]
    %v944 = vsel %vm197, %v931, 0
    %v947 = vsel %vm197, %v932, 0
    %vm949 = vcmask 1043456
    %v951 = vsel %vm949, %v939, 0
    %953 = vmatprep.subr.bf16.mxu0 0
    %954 = vmatpush1.bf16.msra.mxu0 0
    %955 = vmatprep.subr.bf16.mxu0 0
    %956 = vmatpush1.bf16.msra.mxu0 0
    %957 = vmatprep.subr.bf16.mxu0 0
    %958 = vmatpush1.bf16.msra.mxu0 0
    %959 = vmatprep.subr.bf16.mxu0 0
    %960 = vmatpush1.bf16.msra.mxu0 0
    %961 = vmatprep.subr.bf16.mxu0 0
    %962 = vmatpush1.bf16.msra.mxu0 0
    %963 = vmatprep.subr.bf16.mxu0 0
    %964 = vmatpush1.bf16.msra.mxu0 0
    %965 = vmatprep.subr.bf16.mxu0 0
    %966 = vmatpush1.bf16.msra.mxu0 0
    %967 = vmatprep.subr.bf16.mxu0 0
    %968 = vmatpush1.bf16.msra.mxu0 %v951
    %969 = vmatprep.subr.bf16.mxu0 0
    %970 = vmatpush2.bf16.msra.mxu0 0
    %971 = vmatprep.subr.bf16.mxu0 0
    %972 = vmatpush2.bf16.msra.mxu0 0
    %973 = vmatprep.subr.bf16.mxu0 0
    %974 = vmatpush2.bf16.msra.mxu0 0
    %975 = vmatprep.subr.bf16.mxu0 0
    %976 = vmatpush2.bf16.msra.mxu0 0
    %977 = vmatprep.subr.bf16.mxu0 0
    %978 = vmatpush2.bf16.msra.mxu0 0
    %979 = vmatprep.subr.bf16.mxu0 0
    %980 = vmatpush2.bf16.msra.mxu0 0
    %981 = vmatprep.subr.bf16.mxu0 0
    %982 = vmatpush2.bf16.msra.mxu0 0
    %983 = vmatprep.subr.bf16.mxu0 0
    %984 = vmatpush2.bf16.msra.mxu0 0
    %985 = vmatprep.mubr.bf16.mxu0 0
    %986 = vmatmul.mubr.bf16.gmra.mxu0 %v944
    %v987 = vpop.f32.mrf.mxu0
    %v988 = vadd.f32 0.0, %v987
    %v989 = vpop.f32.mrf.mxu0
    %v990 = vpop.f32.mrf.mxu0
    %v991 = vadd.f32 0.0, %v990
    %v992 = vpop.f32.mrf.mxu0
    %993 = vmatprep.mubr.bf16.mxu0 0
    %994 = vmatmul.mubr.bf16.gmra.mxu0 %v947
    %v995 = vpop.f32.mrf.mxu0
    %v996 = vadd.f32 0.0, %v995
    %v997 = vpop.f32.mrf.mxu0
    %v998 = vpop.f32.mrf.mxu0
    %v999 = vadd.f32 0.0, %v998
    %v1000 = vpop.f32.mrf.mxu0
    %1001 = vdwg.mxu0
    %v1003 = vsel %vm197, %v933, 0
    %v1006 = vsel %vm197, %v934, 0
    %v1009 = vsel %vm949, %v940, 0
    %1011 = vmatprep.subr.bf16.mxu0 0
    %1012 = vmatpush1.bf16.msra.mxu0 0
    %1013 = vmatprep.subr.bf16.mxu0 0
    %1014 = vmatpush1.bf16.msra.mxu0 0
    %1015 = vmatprep.subr.bf16.mxu0 0
    %1016 = vmatpush1.bf16.msra.mxu0 0
    %1017 = vmatprep.subr.bf16.mxu0 0
    %1018 = vmatpush1.bf16.msra.mxu0 0
    %1019 = vmatprep.subr.bf16.mxu0 0
    %1020 = vmatpush1.bf16.msra.mxu0 0
    %1021 = vmatprep.subr.bf16.mxu0 0
    %1022 = vmatpush1.bf16.msra.mxu0 0
    %1023 = vmatprep.subr.bf16.mxu0 0
    %1024 = vmatpush1.bf16.msra.mxu0 0
    %1025 = vmatprep.subr.bf16.mxu0 0
    %1026 = vmatpush1.bf16.msra.mxu0 %v1009
    %1027 = vmatprep.subr.bf16.mxu0 0
    %1028 = vmatpush2.bf16.msra.mxu0 0
    %1029 = vmatprep.subr.bf16.mxu0 0
    %1030 = vmatpush2.bf16.msra.mxu0 0
    %1031 = vmatprep.subr.bf16.mxu0 0
    %1032 = vmatpush2.bf16.msra.mxu0 0
    %1033 = vmatprep.subr.bf16.mxu0 0
    %1034 = vmatpush2.bf16.msra.mxu0 0
    %1035 = vmatprep.subr.bf16.mxu0 0
    %1036 = vmatpush2.bf16.msra.mxu0 0
    %1037 = vmatprep.subr.bf16.mxu0 0
    %1038 = vmatpush2.bf16.msra.mxu0 0
    %1039 = vmatprep.subr.bf16.mxu0 0
    %1040 = vmatpush2.bf16.msra.mxu0 0
    %1041 = vmatprep.subr.bf16.mxu0 0
    %1042 = vmatpush2.bf16.msra.mxu0 0
    %1043 = vmatprep.mubr.bf16.mxu0 0
    %1044 = vmatmul.mubr.bf16.gmra.mxu0 %v1003
    %v1045 = vpop.f32.mrf.mxu0
    %v1046 = vadd.f32 0.0, %v1045
    %v1047 = vpop.f32.mrf.mxu0
    %v1048 = vpop.f32.mrf.mxu0
    %v1049 = vadd.f32 0.0, %v1048
    %v1050 = vpop.f32.mrf.mxu0
    %1051 = vmatprep.mubr.bf16.mxu0 0
    %1052 = vmatmul.mubr.bf16.gmra.mxu0 %v1006
    %v1053 = vpop.f32.mrf.mxu0
    %v1054 = vadd.f32 0.0, %v1053
    %v1055 = vpop.f32.mrf.mxu0
    %v1056 = vpop.f32.mrf.mxu0
    %v1057 = vadd.f32 0.0, %v1056
    %v1058 = vpop.f32.mrf.mxu0
    %1059 = vdwg.mxu0
    %v1061 = vsel %vm197, %v935, 0
    %v1064 = vsel %vm197, %v936, 0
    %v1067 = vsel %vm949, %v941, 0
    %1069 = vmatprep.subr.bf16.mxu0 0
    %1070 = vmatpush1.bf16.msra.mxu0 0
    %1071 = vmatprep.subr.bf16.mxu0 0
    %1072 = vmatpush1.bf16.msra.mxu0 0
    %1073 = vmatprep.subr.bf16.mxu0 0
    %1074 = vmatpush1.bf16.msra.mxu0 0
    %1075 = vmatprep.subr.bf16.mxu0 0
    %1076 = vmatpush1.bf16.msra.mxu0 0
    %1077 = vmatprep.subr.bf16.mxu0 0
    %1078 = vmatpush1.bf16.msra.mxu0 0
    %1079 = vmatprep.subr.bf16.mxu0 0
    %1080 = vmatpush1.bf16.msra.mxu0 0
    %1081 = vmatprep.subr.bf16.mxu0 0
    %1082 = vmatpush1.bf16.msra.mxu0 0
    %1083 = vmatprep.subr.bf16.mxu0 0
    %1084 = vmatpush1.bf16.msra.mxu0 %v1067
    %1085 = vmatprep.subr.bf16.mxu0 0
    %1086 = vmatpush2.bf16.msra.mxu0 0
    %1087 = vmatprep.subr.bf16.mxu0 0
    %1088 = vmatpush2.bf16.msra.mxu0 0
    %1089 = vmatprep.subr.bf16.mxu0 0
    %1090 = vmatpush2.bf16.msra.mxu0 0
    %1091 = vmatprep.subr.bf16.mxu0 0
    %1092 = vmatpush2.bf16.msra.mxu0 0
    %1093 = vmatprep.subr.bf16.mxu0 0
    %1094 = vmatpush2.bf16.msra.mxu0 0
    %1095 = vmatprep.subr.bf16.mxu0 0
    %1096 = vmatpush2.bf16.msra.mxu0 0
    %1097 = vmatprep.subr.bf16.mxu0 0
    %1098 = vmatpush2.bf16.msra.mxu0 0
    %1099 = vmatprep.subr.bf16.mxu0 0
    %1100 = vmatpush2.bf16.msra.mxu0 0
    %1101 = vmatprep.mubr.bf16.mxu0 0
    %1102 = vmatmul.mubr.bf16.gmra.mxu0 %v1061
    %v1103 = vpop.f32.mrf.mxu0
    %v1104 = vadd.f32 0.0, %v1103
    %v1105 = vpop.f32.mrf.mxu0
    %v1106 = vpop.f32.mrf.mxu0
    %v1107 = vadd.f32 0.0, %v1106
    %v1108 = vpop.f32.mrf.mxu0
    %1109 = vmatprep.mubr.bf16.mxu0 0
    %1110 = vmatmul.mubr.bf16.gmra.mxu0 %v1064
    %v1111 = vpop.f32.mrf.mxu0
    %v1112 = vadd.f32 0.0, %v1111
    %v1113 = vpop.f32.mrf.mxu0
    %v1114 = vpop.f32.mrf.mxu0
    %v1115 = vadd.f32 0.0, %v1114
    %v1116 = vpop.f32.mrf.mxu0
    %1117 = vdwg.mxu0
    %v1119 = vsel %vm197, %v937, 0
    %v1122 = vsel %vm197, %v938, 0
    %v1125 = vsel %vm949, %v942, 0
    %1127 = vmatprep.subr.bf16.mxu0 0
    %1128 = vmatpush1.bf16.msra.mxu0 0
    %1129 = vmatprep.subr.bf16.mxu0 0
    %1130 = vmatpush1.bf16.msra.mxu0 0
    %1131 = vmatprep.subr.bf16.mxu0 0
    %1132 = vmatpush1.bf16.msra.mxu0 0
    %1133 = vmatprep.subr.bf16.mxu0 0
    %1134 = vmatpush1.bf16.msra.mxu0 0
    %1135 = vmatprep.subr.bf16.mxu0 0
    %1136 = vmatpush1.bf16.msra.mxu0 0
    %1137 = vmatprep.subr.bf16.mxu0 0
    %1138 = vmatpush1.bf16.msra.mxu0 0
    %1139 = vmatprep.subr.bf16.mxu0 0
    %1140 = vmatpush1.bf16.msra.mxu0 0
    %1141 = vmatprep.subr.bf16.mxu0 0
    %1142 = vmatpush1.bf16.msra.mxu0 %v1125
    %1143 = vmatprep.subr.bf16.mxu0 0
    %1144 = vmatpush2.bf16.msra.mxu0 0
    %1145 = vmatprep.subr.bf16.mxu0 0
    %1146 = vmatpush2.bf16.msra.mxu0 0
    %1147 = vmatprep.subr.bf16.mxu0 0
    %1148 = vmatpush2.bf16.msra.mxu0 0
    %1149 = vmatprep.subr.bf16.mxu0 0
    %1150 = vmatpush2.bf16.msra.mxu0 0
    %1151 = vmatprep.subr.bf16.mxu0 0
    %1152 = vmatpush2.bf16.msra.mxu0 0
    %1153 = vmatprep.subr.bf16.mxu0 0
    %1154 = vmatpush2.bf16.msra.mxu0 0
    %1155 = vmatprep.subr.bf16.mxu0 0
    %1156 = vmatpush2.bf16.msra.mxu0 0
    %1157 = vmatprep.subr.bf16.mxu0 0
    %1158 = vmatpush2.bf16.msra.mxu0 0
    %1159 = vmatprep.mubr.bf16.mxu0 0
    %1160 = vmatmul.mubr.bf16.gmra.mxu0 %v1119
    %v1161 = vpop.f32.mrf.mxu0
    %v1162 = vadd.f32 0.0, %v1161
    %v1163 = vpop.f32.mrf.mxu0
    %v1164 = vpop.f32.mrf.mxu0
    %v1165 = vadd.f32 0.0, %v1164
    %v1166 = vpop.f32.mrf.mxu0
    %1167 = vmatprep.mubr.bf16.mxu0 0
    %1168 = vmatmul.mubr.bf16.gmra.mxu0 %v1122
    %v1169 = vpop.f32.mrf.mxu0
    %v1170 = vadd.f32 0.0, %v1169
    %v1171 = vpop.f32.mrf.mxu0
    %v1172 = vpop.f32.mrf.mxu0
    %v1173 = vadd.f32 0.0, %v1172
    %v1174 = vpop.f32.mrf.mxu0
    %1175 = vdwg.mxu0
    %v1176 = vsel %vm502, %v988, 0.0
    %v1177 = vsel %vm502, %v1046, 0.0
    %v1178 = vadd.f32 %v1176, %v1177
    %v1179 = vsel %vm502, %v1104, 0.0
    %v1180 = vadd.f32 %v1178, %v1179
    %v1181 = vsel %vm502, %v1162, 0.0
    %v1182 = vadd.f32 %v1180, %v1181
    %v1183 = vsel %vm502, %v991, 0.0
    %v1184 = vsel %vm502, %v1049, 0.0
    %v1185 = vadd.f32 %v1183, %v1184
    %v1186 = vsel %vm502, %v1107, 0.0
    %v1187 = vadd.f32 %v1185, %v1186
    %v1188 = vsel %vm502, %v1165, 0.0
    %v1189 = vadd.f32 %v1187, %v1188
    %v1190 = vsel %vm502, %v996, 0.0
    %v1191 = vsel %vm502, %v1054, 0.0
    %v1192 = vadd.f32 %v1190, %v1191
    %v1193 = vsel %vm502, %v1112, 0.0
    %v1194 = vadd.f32 %v1192, %v1193
    %v1195 = vsel %vm502, %v1170, 0.0
    %v1196 = vadd.f32 %v1194, %v1195
    %v1197 = vsel %vm502, %v999, 0.0
    %v1198 = vsel %vm502, %v1057, 0.0
    %v1199 = vadd.f32 %v1197, %v1198
    %v1200 = vsel %vm502, %v1115, 0.0
    %v1201 = vadd.f32 %v1199, %v1200
    %v1202 = vsel %vm502, %v1173, 0.0
    %v1203 = vadd.f32 %v1201, %v1202
    %v1204 = vld [vmem:[%s7] sm:$0x1]
    %v1206 = vlaneseq
    %v1207 = vshrl.u32 %v1206, 7
    %v1208 = vsub.s32 0, %v1207
    %v1209 = vrot.slane %v1204, %v1208
    %v1211 = vadd.f32 %v1182, %v1209
    %v1212 = vadd.f32 %v1189, %v1209
    %v1213 = vadd.f32 %v1196, %v1209
    %v1214 = vadd.f32 %v1203, %v1209
    %v1215 = vadd.f32 %v159, %v1211
    %v1216 = vadd.f32 %v162, %v1212
    %v1217 = vadd.f32 %v167, %v1213
    %v1218 = vadd.f32 %v170, %v1214
    %v1219 = vld [vmem:[%s8] sm:$0x1]
    %v1220 = vld [vmem:[%s9] sm:$0x1]
    %v1221 = vsel %vm502, %v1215, 0.0
    %1222 = vadd.xlane.f32.xlu0 %v1221
    %v1223 = vpop.xlane.xlu0 %1222
    %v1224 = vsel %vm502, %v1216, 0.0
    %1225 = vadd.xlane.f32.xlu0 %v1224
    %v1226 = vpop.xlane.xlu0 %1225
    %v1227 = vsel %vm502, %v1217, 0.0
    %1228 = vadd.xlane.f32.xlu0 %v1227
    %v1229 = vpop.xlane.xlu0 %1228
    %v1230 = vsel %vm502, %v1218, 0.0
    %1231 = vadd.xlane.f32.xlu0 %v1230
    %v1232 = vpop.xlane.xlu0 %1231
    %v1233 = vrcp.pop 32.0
    %v1234 = vmul.f32 %v1223, %v1233
    %v1235 = vmul.f32 %v1226, %v1233
    %v1236 = vmul.f32 %v1229, %v1233
    %v1237 = vmul.f32 %v1232, %v1233
    %v1238 = vsub.f32 %v1215, %v1234
    %v1239 = vsub.f32 %v1216, %v1235
    %v1240 = vsub.f32 %v1217, %v1236
    %v1241 = vsub.f32 %v1218, %v1237
    %v1242 = vmul.f32 %v1238, %v1238
    %v1243 = vmul.f32 %v1239, %v1239
    %v1244 = vmul.f32 %v1240, %v1240
    %v1245 = vmul.f32 %v1241, %v1241
    %v1246 = vsel %vm502, %v1242, 0.0
    %1247 = vadd.xlane.f32.xlu0 %v1246
    %v1248 = vpop.xlane.xlu0 %1247
    %v1249 = vsel %vm502, %v1243, 0.0
    %1250 = vadd.xlane.f32.xlu0 %v1249
    %v1251 = vpop.xlane.xlu0 %1250
    %v1252 = vsel %vm502, %v1244, 0.0
    %1253 = vadd.xlane.f32.xlu0 %v1252
    %v1254 = vpop.xlane.xlu0 %1253
    %v1255 = vsel %vm502, %v1245, 0.0
    %1256 = vadd.xlane.f32.xlu0 %v1255
    %v1257 = vpop.xlane.xlu0 %1256
    %v1258 = vmul.f32 %v1248, %v1233
    %v1259 = vmul.f32 %v1251, %v1233
    %v1260 = vmul.f32 %v1254, %v1233
    %v1261 = vmul.f32 %v1257, %v1233
    %v1262 = vadd.f32 %v1258, 1e-05
    %v1263 = vadd.f32 %v1259, 1e-05
    %v1264 = vadd.f32 %v1260, 1e-05
    %v1265 = vadd.f32 %v1261, 1e-05
    %v1266 = vrsqrt.pop %v1262
    %v1267 = vrsqrt.pop %v1263
    %v1268 = vrsqrt.pop %v1264
    %v1269 = vrsqrt.pop %v1265
    %v1270 = vmul.f32 %v1238, %v1266
    %v1271 = vmul.f32 %v1239, %v1267
    %v1272 = vmul.f32 %v1240, %v1268
    %v1273 = vmul.f32 %v1241, %v1269
    %v1275 = vlaneseq
    %v1276 = vshrl.u32 %v1275, 7
    %v1277 = vsub.s32 0, %v1276
    %v1278 = vrot.slane %v1219, %v1277
    %v1280 = vmul.f32 %v1270, %v1278
    %v1281 = vmul.f32 %v1271, %v1278
    %v1282 = vmul.f32 %v1272, %v1278
    %v1283 = vmul.f32 %v1273, %v1278
    %v1285 = vlaneseq
    %v1286 = vshrl.u32 %v1285, 7
    %v1287 = vsub.s32 0, %v1286
    %v1288 = vrot.slane %v1220, %v1287
    %v1290 = vadd.f32 %v1280, %v1288
    %v1291 = vadd.f32 %v1281, %v1288
    %v1292 = vadd.f32 %v1282, %v1288
    %v1293 = vadd.f32 %v1283, %v1288
    %v1294 = vpack.c.bf16 %v1291, %v1290
    %v1295 = vpack.c.bf16 %v1293, %v1292
    %v1296 = vld [vmem:[%s10] sm:$0xf]
    %v1297 = vld [vmem:[%s10 + $0x4] sm:$0xf]
    %v1298 = vld [vmem:[%s10 + $0x8] sm:$0xf]
    %v1299 = vld [vmem:[%s10 + $0xc] sm:$0xf]
    %v1300 = vld [vmem:[%s11] sm:$0x1]
    %v1302 = vlaneseq
    %v1303 = vshrl.u32 %v1302, 7
    %v1304 = vsub.s32 0, %v1303
    %v1305 = vrot.slane %v1300, %v1304
    %v1311 = vunpack.c.l.b16 %v1296
    %v1312 = vunpack.c.l.b16 %v1297
    %v1313 = vunpack.c.l.b16 %v1298
    %v1314 = vunpack.c.l.b16 %v1299
    %v1315 = vpack.c.b16 %v1312, %v1311
    %v1316 = vpack.c.b16 %v1314, %v1313
    %v1320 = vsel %vm502, %v1294, 0
    %v1323 = vsel %vm502, %v1295, 0
    %1325 = vmatprep.subr.bf16.mxu0 0
    %1326 = vmatpush1.bf16.msra.mxu0 0
    %1327 = vmatprep.subr.bf16.mxu0 0
    %1328 = vmatpush1.bf16.msra.mxu0 0
    %1329 = vmatprep.subr.bf16.mxu0 0
    %1330 = vmatpush1.bf16.msra.mxu0 0
    %1331 = vmatprep.subr.bf16.mxu0 0
    %1332 = vmatpush1.bf16.msra.mxu0 0
    %1333 = vmatprep.subr.bf16.mxu0 0
    %1334 = vmatpush1.bf16.msra.mxu0 0
    %1335 = vmatprep.subr.bf16.mxu0 0
    %1336 = vmatpush1.bf16.msra.mxu0 0
    %1337 = vmatprep.subr.bf16.mxu0 0
    %1338 = vmatpush1.bf16.msra.mxu0 %v1316
    %1339 = vmatprep.subr.bf16.mxu0 0
    %1340 = vmatpush1.bf16.msra.mxu0 %v1315
    %1341 = vmatprep.subr.bf16.mxu0 0
    %1342 = vmatpush2.bf16.msra.mxu0 0
    %1343 = vmatprep.subr.bf16.mxu0 0
    %1344 = vmatpush2.bf16.msra.mxu0 0
    %1345 = vmatprep.subr.bf16.mxu0 0
    %1346 = vmatpush2.bf16.msra.mxu0 0
    %1347 = vmatprep.subr.bf16.mxu0 0
    %1348 = vmatpush2.bf16.msra.mxu0 0
    %1349 = vmatprep.subr.bf16.mxu0 0
    %1350 = vmatpush2.bf16.msra.mxu0 0
    %1351 = vmatprep.subr.bf16.mxu0 0
    %1352 = vmatpush2.bf16.msra.mxu0 0
    %1353 = vmatprep.subr.bf16.mxu0 0
    %1354 = vmatpush2.bf16.msra.mxu0 0
    %1355 = vmatprep.subr.bf16.mxu0 0
    %1356 = vmatpush2.bf16.msra.mxu0 0
    %1357 = vmatprep.mubr.bf16.mxu0 0
    %1358 = vmatmul.mubr.bf16.gmra.mxu0 %v1320
    %v1359 = vpop.f32.mrf.mxu0
    %v1360 = vadd.f32 %v1305, %v1359
    %v1361 = vpop.f32.mrf.mxu0
    %v1362 = vpop.f32.mrf.mxu0
    %v1363 = vadd.f32 %v1305, %v1362
    %v1364 = vpop.f32.mrf.mxu0
    %1365 = vmatprep.mubr.bf16.mxu0 0
    %1366 = vmatmul.mubr.bf16.gmra.mxu0 %v1323
    %v1367 = vpop.f32.mrf.mxu0
    %v1368 = vadd.f32 %v1305, %v1367
    %v1369 = vpop.f32.mrf.mxu0
    %v1370 = vpop.f32.mrf.mxu0
    %v1371 = vadd.f32 %v1305, %v1370
    %v1372 = vpop.f32.mrf.mxu0
    %1373 = vdwg.mxu0
    %v1374 = vmax.f32 %v1360, 0.0
    %v1375 = vmax.f32 %v1363, 0.0
    %v1376 = vmax.f32 %v1368, 0.0
    %v1377 = vmax.f32 %v1371, 0.0
    %v1378 = vpack.c.bf16 %v1375, %v1374
    %v1379 = vpack.c.bf16 %v1377, %v1376
    %v1380 = vld [vmem:[%s12] sm:$0xf]
    %v1381 = vld [vmem:[%s13] sm:$0x1]
    %v1383 = vlaneseq
    %v1384 = vshrl.u32 %v1383, 7
    %v1385 = vsub.s32 0, %v1384
    %v1386 = vrot.slane %v1381, %v1385
    %v1389 = vsel %vm197, %v1378, 0
    %v1392 = vsel %vm197, %v1379, 0
    %v1395 = vsel %vm949, %v1380, 0
    %1397 = vmatprep.subr.bf16.mxu0 0
    %1398 = vmatpush1.bf16.msra.mxu0 0
    %1399 = vmatprep.subr.bf16.mxu0 0
    %1400 = vmatpush1.bf16.msra.mxu0 0
    %1401 = vmatprep.subr.bf16.mxu0 0
    %1402 = vmatpush1.bf16.msra.mxu0 0
    %1403 = vmatprep.subr.bf16.mxu0 0
    %1404 = vmatpush1.bf16.msra.mxu0 0
    %1405 = vmatprep.subr.bf16.mxu0 0
    %1406 = vmatpush1.bf16.msra.mxu0 0
    %1407 = vmatprep.subr.bf16.mxu0 0
    %1408 = vmatpush1.bf16.msra.mxu0 0
    %1409 = vmatprep.subr.bf16.mxu0 0
    %1410 = vmatpush1.bf16.msra.mxu0 0
    %1411 = vmatprep.subr.bf16.mxu0 0
    %1412 = vmatpush1.bf16.msra.mxu0 %v1395
    %1413 = vmatprep.subr.bf16.mxu0 0
    %1414 = vmatpush2.bf16.msra.mxu0 0
    %1415 = vmatprep.subr.bf16.mxu0 0
    %1416 = vmatpush2.bf16.msra.mxu0 0
    %1417 = vmatprep.subr.bf16.mxu0 0
    %1418 = vmatpush2.bf16.msra.mxu0 0
    %1419 = vmatprep.subr.bf16.mxu0 0
    %1420 = vmatpush2.bf16.msra.mxu0 0
    %1421 = vmatprep.subr.bf16.mxu0 0
    %1422 = vmatpush2.bf16.msra.mxu0 0
    %1423 = vmatprep.subr.bf16.mxu0 0
    %1424 = vmatpush2.bf16.msra.mxu0 0
    %1425 = vmatprep.subr.bf16.mxu0 0
    %1426 = vmatpush2.bf16.msra.mxu0 0
    %1427 = vmatprep.subr.bf16.mxu0 0
    %1428 = vmatpush2.bf16.msra.mxu0 0
    %1429 = vmatprep.mubr.bf16.mxu0 0
    %1430 = vmatmul.mubr.bf16.gmra.mxu0 %v1389
    %v1431 = vpop.f32.mrf.mxu0
    %v1432 = vadd.f32 %v1386, %v1431
    %v1433 = vpop.f32.mrf.mxu0
    %v1434 = vpop.f32.mrf.mxu0
    %v1435 = vadd.f32 %v1386, %v1434
    %v1436 = vpop.f32.mrf.mxu0
    %1437 = vmatprep.mubr.bf16.mxu0 0
    %1438 = vmatmul.mubr.bf16.gmra.mxu0 %v1392
    %v1439 = vpop.f32.mrf.mxu0
    %v1440 = vadd.f32 %v1386, %v1439
    %v1441 = vpop.f32.mrf.mxu0
    %v1442 = vpop.f32.mrf.mxu0
    %v1443 = vadd.f32 %v1386, %v1442
    %v1444 = vpop.f32.mrf.mxu0
    %1445 = vdwg.mxu0
    %v1446 = vadd.f32 %v1290, %v1432
    %v1447 = vadd.f32 %v1291, %v1435
    %v1448 = vadd.f32 %v1292, %v1440
    %v1449 = vadd.f32 %v1293, %v1443
    %v1450 = vld [vmem:[%s14] sm:$0x1]
    %v1451 = vld [vmem:[%s15] sm:$0x1]
    %v1452 = vsel %vm502, %v1446, 0.0
    %1453 = vadd.xlane.f32.xlu0 %v1452
    %v1454 = vpop.xlane.xlu0 %1453
    %v1455 = vsel %vm502, %v1447, 0.0
    %1456 = vadd.xlane.f32.xlu0 %v1455
    %v1457 = vpop.xlane.xlu0 %1456
    %v1458 = vsel %vm502, %v1448, 0.0
    %1459 = vadd.xlane.f32.xlu0 %v1458
    %v1460 = vpop.xlane.xlu0 %1459
    %v1461 = vsel %vm502, %v1449, 0.0
    %1462 = vadd.xlane.f32.xlu0 %v1461
    %v1463 = vpop.xlane.xlu0 %1462
    %v1464 = vmul.f32 %v1454, %v1233
    %v1465 = vmul.f32 %v1457, %v1233
    %v1466 = vmul.f32 %v1460, %v1233
    %v1467 = vmul.f32 %v1463, %v1233
    %v1468 = vsub.f32 %v1446, %v1464
    %v1469 = vsub.f32 %v1447, %v1465
    %v1470 = vsub.f32 %v1448, %v1466
    %v1471 = vsub.f32 %v1449, %v1467
    %v1472 = vmul.f32 %v1468, %v1468
    %v1473 = vmul.f32 %v1469, %v1469
    %v1474 = vmul.f32 %v1470, %v1470
    %v1475 = vmul.f32 %v1471, %v1471
    %v1476 = vsel %vm502, %v1472, 0.0
    %1477 = vadd.xlane.f32.xlu0 %v1476
    %v1478 = vpop.xlane.xlu0 %1477
    %v1479 = vsel %vm502, %v1473, 0.0
    %1480 = vadd.xlane.f32.xlu0 %v1479
    %v1481 = vpop.xlane.xlu0 %1480
    %v1482 = vsel %vm502, %v1474, 0.0
    %1483 = vadd.xlane.f32.xlu0 %v1482
    %v1484 = vpop.xlane.xlu0 %1483
    %v1485 = vsel %vm502, %v1475, 0.0
    %1486 = vadd.xlane.f32.xlu0 %v1485
    %v1487 = vpop.xlane.xlu0 %1486
    %v1488 = vmul.f32 %v1478, %v1233
    %v1489 = vmul.f32 %v1481, %v1233
    %v1490 = vmul.f32 %v1484, %v1233
    %v1491 = vmul.f32 %v1487, %v1233
    %v1492 = vadd.f32 %v1488, 1e-05
    %v1493 = vadd.f32 %v1489, 1e-05
    %v1494 = vadd.f32 %v1490, 1e-05
    %v1495 = vadd.f32 %v1491, 1e-05
    %v1496 = vrsqrt.pop %v1492
    %v1497 = vrsqrt.pop %v1493
    %v1498 = vrsqrt.pop %v1494
    %v1499 = vrsqrt.pop %v1495
    %v1500 = vmul.f32 %v1468, %v1496
    %v1501 = vmul.f32 %v1469, %v1497
    %v1502 = vmul.f32 %v1470, %v1498
    %v1503 = vmul.f32 %v1471, %v1499
    %v1505 = vlaneseq
    %v1506 = vshrl.u32 %v1505, 7
    %v1507 = vsub.s32 0, %v1506
    %v1508 = vrot.slane %v1450, %v1507
    %v1510 = vmul.f32 %v1500, %v1508
    %v1511 = vmul.f32 %v1501, %v1508
    %v1512 = vmul.f32 %v1502, %v1508
    %v1513 = vmul.f32 %v1503, %v1508
    %v1515 = vlaneseq
    %v1516 = vshrl.u32 %v1515, 7
    %v1517 = vsub.s32 0, %v1516
    %v1518 = vrot.slane %v1451, %v1517
    %v1520 = vadd.f32 %v1510, %v1518
    %v1521 = vadd.f32 %v1511, %v1518
    %v1522 = vadd.f32 %v1512, %v1518
    %v1523 = vadd.f32 %v1513, %v1518
    %v1524 = vadd.f32 %v1520, %v1521
    %v1525 = vadd.f32 %v1524, %v1522
    %v1526 = vadd.f32 %v1525, %v1523
    %v1527 = vmul.f32 %v1526, 0.25
    %1528 = vst.msk [vmem:[#allocation2] sm:$0xff] %vm502, %v1527
    // Predicated region
    $region66: #{trans_base_forward.1} parent=1 // pred_check
      _
    $region67: #{trans_base_forward.1} parent=1 // pred_check_branch
      %1530 = sbr.rel (0) target = $region69
    $region68: #{trans_base_forward.1} parent=1 // pred_region
      %s1532 = ssub.s32 128, 128
      %1533 = vsyncadd [#allocation3], %s1532
      %s1535 = sshll.u32 [#allocation2], 4
      %s1536 = int_to_ptr.vmem [resolvable:$true] %s1535
      %1538 = dma.vmem_to_hbm [thread:$0]  %s1536, 128, %s16, [#allocation3]
    $region69: #{trans_base_forward.1} parent=1 // pred_fallthru
      _
    // Predicated region
    $region70: #{trans_base_forward.1} parent=1 // pred_check
      _
    $region71: #{trans_base_forward.1} parent=1 // pred_check_branch
      %1540 = sbr.rel (0) target = $region73
    $region72: #{trans_base_forward.1} parent=1 // pred_region
      %1541 = dma.done [#allocation3], 128
    $region73: #{trans_base_forward.1} parent=1 // pred_fallthru
      _
    %1542 = vsyncpa [#allocation3], 1

</llo_original>
